<compile_context>
chip_gen: v5e
topology: v5e:2x2
jax: 0.10.0
libtpu: 0.0.40
codegen_flags: <defaults>
</compile_context>

<pallas_src>
import functools
import math

import jax
import jax.numpy as jnp
from jax.experimental import pallas as pl
from jax.experimental.pallas import tpu as pltpu


def _initial_params(num_rbf, rbound_upper, rbound_lower=0.0):
    """Deterministic parameter init mirroring NewExpNormalSmearing._initial_params."""
    start_value = math.exp(-rbound_upper)
    end_value = math.exp(-rbound_lower)
    means = jnp.linspace(start_value, end_value, num_rbf, dtype=jnp.float32)
    betas = jnp.full(
        (num_rbf,), (2.0 / num_rbf * (end_value - start_value)) ** (-2), dtype=jnp.float32
    )
    return means, betas


def _round_up(x, m):
    return ((x + m - 1) // m) * m


def _rbf_kernel(t_ref, const_ref, out_ref, *, pack):
    # t_ref:     (R, pack)     t = exp(-dist), packed `pack` edges per row (exp hoisted
    #                          to the wrapper -> only one wide exp per output vreg here).
    # const_ref: (pack + 2, L) rows 0..pack-1: 0/1 lane-group masks,
    #                          row pack: -means tiled, row pack+1: -betas tiled.
    # out_ref:   (R, L)        L = pack * num_rbf (lane-dense, 128 for num_rbf=32).
    t = t_ref[...]
    nmeans = const_ref[pack:pack + 1, :]
    nbetas = const_ref[pack + 1:pack + 2, :]
    # Lane-broadcast each packed edge into its num_rbf-wide lane group; fold the means
    # subtraction into the first term (VPU mul-adds only, masks keep pad lanes inert).
    x = t[:, 0:1] * const_ref[0:1, :] + nmeans
    for p in range(1, pack):
        x = x + t[:, p:p + 1] * const_ref[p:p + 1, :]
    out_ref[...] = jnp.exp(nbetas * (x * x)).astype(out_ref.dtype)


def exp_normal_smearing_ref(dist, means, betas):
    # Pure-JAX reference matching the PyTorch forward semantics. dist: (E, 1).
    return jnp.exp(-betas * jnp.square(jnp.exp(-dist) - means))


def exp_normal_smearing(dist, means, betas, *, block_rows=2048, out_dtype=None,
                        min_pallas_edges=1024):
    """dist: (E, 1) or (E,) float32 -> (E, num_rbf)."""
    num_rbf = means.shape[0]
    d_flat = dist.reshape(-1).astype(jnp.float32)
    E = d_flat.shape[0]
    out_dtype = jnp.float32 if out_dtype is None else out_dtype

    # Tiny problems: XLA fusion of the 3-op expression beats kernel launch + DMA costs.
    if E < min_pallas_edges:
        return exp_normal_smearing_ref(d_flat.reshape(E, 1), means, betas).astype(out_dtype)

    # Pack `pack` consecutive edges per 128-lane row when num_rbf divides 128.
    if num_rbf <= 128 and 128 % num_rbf == 0:
        pack = 128 // num_rbf
    else:
        # TODO(synk): num_rbf not dividing 128 reverts to masked (<128-lane) stores.
        pack = 1
    L = pack * num_rbf

    # Pad only to one (8, 128) tile of the packed layout (<= 8*pack - 1 extra edges);
    # the grid itself is ragged via pl.cdiv, so there is no block-multiple padding,
    # no extra HBM round-trip of dist, and at most a few edges of over-compute.
    E_pad = _round_up(E, 8 * pack)
    rows = E_pad // pack

    # Keep the grid length >= 2 so the single "parallel" axis can split across the two
    # TensorCores on v7x; otherwise use the largest requested block (amortizes the
    # ~0.35us per-grid-step overhead).
    block_rows = min(block_rows, max(8, _round_up(pl.cdiv(rows, 2), 8)))
    grid = (pl.cdiv(rows, block_rows),)

    # Hoist exp(-dist) out of the kernel: dist is only 4 B/edge (~6% extra HBM traffic)
    # and this halves the kernel's EUP work. Zero-fill pad => finite t = 1 in pad lanes.
    t_packed = jnp.exp(-jnp.pad(d_flat, (0, E_pad - E)).reshape(rows, pack))

    # Resident constant block: [lane-group masks (pack, L); -means (1, L); -betas (1, L)].
    masks = jnp.repeat(jnp.eye(pack, dtype=jnp.float32), num_rbf, axis=1)     # (pack, L)
    nmeans_t = jnp.tile(-means.astype(jnp.float32), pack).reshape(1, L)
    nbetas_t = jnp.tile(-betas.astype(jnp.float32), pack).reshape(1, L)
    const = jnp.concatenate([masks, nmeans_t, nbetas_t], axis=0)              # (pack+2, L)

    out_packed = pl.pallas_call(
        functools.partial(_rbf_kernel, pack=pack),
        out_shape=jax.ShapeDtypeStruct((rows, L), out_dtype),
        grid_spec=pltpu.PrefetchScalarGridSpec(
            num_scalar_prefetch=0,
            grid=grid,
            in_specs=[
                pl.BlockSpec((block_rows, pack), lambda i: (i, 0)),
                pl.BlockSpec((pack + 2, L), lambda i: (0, 0)),   # resident constants
            ],
            out_specs=pl.BlockSpec((block_rows, L), lambda i: (i, 0)),
        ),
        compiler_params=pltpu.CompilerParams(
            dimension_semantics=("parallel",),
        ),
    )(t_packed, const)

    # Row-major view back to per-edge layout (free reshape); slice only if padded.
    out = out_packed.reshape(E_pad, num_rbf)
    if E_pad != E:
        out = out[:E]
    return out


if __name__ == "__main__":
    num_rbf = 32
    rbound_upper = 5.0
    rbound_lower = 0.0
    E = 4097  # ragged edge count: exercises pack-level padding and a ragged 2-step grid

    means, betas = _initial_params(num_rbf, rbound_upper, rbound_lower)

    key = jax.random.PRNGKey(0)
    dist = jax.random.uniform(key, (E, 1), dtype=jnp.float32, minval=0.0, maxval=rbound_upper)

    out = exp_normal_smearing(dist, means, betas)
    out = jax.block_until_ready(out)

    ref = exp_normal_smearing_ref(dist, means, betas)
    assert out.shape == (E, num_rbf)
    assert jnp.allclose(out, ref, atol=1e-5, rtol=1e-5)

    print("KERNEL_OK")
</pallas_src>

<mosaic_0001>
module attributes {stable_mosaic.version = 11 : i64} {
  func.func @_rbf_kernel(%arg0: i32, %arg1: memref<520x4xf32, #tpu.memory_space<vmem>>, %arg2: memref<6x128xf32, #tpu.memory_space<vmem>>, %arg3: memref<520x128xf32, #tpu.memory_space<vmem>>) attributes {dimension_semantics = [#tpu.dimension_semantics<parallel>], iteration_bounds = array<i64: 2>, scalar_prefetch = 0 : i64, scratch_operands = 0 : i64, tpu.core_type = #tpu.core_type<tc>, window_params = [{transform_indices = @transform_0, window_bounds = array<i64: 520, 4>}, {pipeline_mode = #tpu.pipeline_mode<synchronous>, transform_indices = @transform_1, window_bounds = array<i64: 6, 128>}, {transform_indices = @transform_2, window_bounds = array<i64: 520, 128>}]} {
    %c0 = arith.constant 0 : index
    %c0_0 = arith.constant 0 : index
    %0 = vector.load %arg1[%c0, %c0_0] : memref<520x4xf32, #tpu.memory_space<vmem>>, vector<520x4xf32>
    %c4 = arith.constant 4 : index
    %c0_1 = arith.constant 0 : index
    %1 = vector.load %arg2[%c4, %c0_1] : memref<6x128xf32, #tpu.memory_space<vmem>>, vector<1x128xf32>
    %c5 = arith.constant 5 : index
    %c0_2 = arith.constant 0 : index
    %2 = vector.load %arg2[%c5, %c0_2] : memref<6x128xf32, #tpu.memory_space<vmem>>, vector<1x128xf32>
    %3 = vector.extract_strided_slice %0 {offsets = [0, 0], sizes = [520, 1], strides = [1, 1]} : vector<520x4xf32> to vector<520x1xf32>
    %c0_3 = arith.constant 0 : index
    %c0_4 = arith.constant 0 : index
    %4 = vector.load %arg2[%c0_3, %c0_4] : memref<6x128xf32, #tpu.memory_space<vmem>>, vector<1x128xf32>
    %5 = vector.broadcast %3 : vector<520x1xf32> to vector<520x128xf32>
    %6 = vector.broadcast %4 : vector<1x128xf32> to vector<520x128xf32>
    %7 = arith.mulf %5, %6 : vector<520x128xf32>
    %8 = vector.broadcast %1 : vector<1x128xf32> to vector<520x128xf32>
    %9 = arith.addf %7, %8 : vector<520x128xf32>
    %10 = vector.extract_strided_slice %0 {offsets = [0, 1], sizes = [520, 1], strides = [1, 1]} : vector<520x4xf32> to vector<520x1xf32>
    %c1 = arith.constant 1 : index
    %c0_5 = arith.constant 0 : index
    %11 = vector.load %arg2[%c1, %c0_5] : memref<6x128xf32, #tpu.memory_space<vmem>>, vector<1x128xf32>
    %12 = vector.broadcast %10 : vector<520x1xf32> to vector<520x128xf32>
    %13 = vector.broadcast %11 : vector<1x128xf32> to vector<520x128xf32>
    %14 = arith.mulf %12, %13 : vector<520x128xf32>
    %15 = arith.addf %9, %14 : vector<520x128xf32>
    %16 = vector.extract_strided_slice %0 {offsets = [0, 2], sizes = [520, 1], strides = [1, 1]} : vector<520x4xf32> to vector<520x1xf32>
    %c2 = arith.constant 2 : index
    %c0_6 = arith.constant 0 : index
    %17 = vector.load %arg2[%c2, %c0_6] : memref<6x128xf32, #tpu.memory_space<vmem>>, vector<1x128xf32>
    %18 = vector.broadcast %16 : vector<520x1xf32> to vector<520x128xf32>
    %19 = vector.broadcast %17 : vector<1x128xf32> to vector<520x128xf32>
    %20 = arith.mulf %18, %19 : vector<520x128xf32>
    %21 = arith.addf %15, %20 : vector<520x128xf32>
    %22 = vector.extract_strided_slice %0 {offsets = [0, 3], sizes = [520, 1], strides = [1, 1]} : vector<520x4xf32> to vector<520x1xf32>
    %c3 = arith.constant 3 : index
    %c0_7 = arith.constant 0 : index
    %23 = vector.load %arg2[%c3, %c0_7] : memref<6x128xf32, #tpu.memory_space<vmem>>, vector<1x128xf32>
    %24 = vector.broadcast %22 : vector<520x1xf32> to vector<520x128xf32>
    %25 = vector.broadcast %23 : vector<1x128xf32> to vector<520x128xf32>
    %26 = arith.mulf %24, %25 : vector<520x128xf32>
    %27 = arith.addf %21, %26 : vector<520x128xf32>
    %28 = arith.mulf %27, %27 : vector<520x128xf32>
    %29 = vector.broadcast %2 : vector<1x128xf32> to vector<520x128xf32>
    %30 = arith.mulf %29, %28 : vector<520x128xf32>
    %31 = math.exp %30 : vector<520x128xf32>
    %c0_8 = arith.constant 0 : index
    %c0_9 = arith.constant 0 : index
    %32 = vector.load %arg3[%c0_8, %c0_9] : memref<520x128xf32, #tpu.memory_space<vmem>>, vector<520x128xf32>
    tpu.vector_store %arg3[%c0_8, %c0_9], %31 {strides = array<i32>} : memref<520x128xf32, #tpu.memory_space<vmem>>, vector<520x128xf32>,
    return
  }
  func.func @transform_0(%arg0: i32) -> (i32, i32) {
    %c0_i32 = arith.constant 0 : i32
    %c0_i32_0 = arith.constant 0 : i32
    return %arg0, %c0_i32 : i32, i32
  }
  func.func @transform_1(%arg0: i32) -> (i32, i32) {
    %c0_i32 = arith.constant 0 : i32
    %c0_i32_0 = arith.constant 0 : i32
    %c0_i32_1 = arith.constant 0 : i32
    return %c0_i32, %c0_i32_0 : i32, i32
  }
  func.func @transform_2(%arg0: i32) -> (i32, i32) {
    %c0_i32 = arith.constant 0 : i32
    %c0_i32_0 = arith.constant 0 : i32
    return %arg0, %c0_i32 : i32, i32
  }
}

</mosaic_0001>

<llo_original>
// kernel: tpu_custom_call.1
$region0: #{tpu_custom_call.1}
  #allocation0 [shape = 'u32[]', space=smem, size = 0x4, offset = 0x4, fixed_abs, tag = 'smem constant byte address 0x4 - core index']
  #allocation1 [shape = 'u32[72,128]{1,0:T(1,128)}', space=vmem, size = 0x9000, scoped, tag = 'internal scratch']
  %s0 = inlined_call_operand.vmem [shape: f32[1032,4], index: 0, kind: input, shape index: {}]
  %s1 = inlined_call_operand.vmem [shape: f32[6,128], index: 1, kind: input, shape index: {}]
  %s2 = inlined_call_operand.hbm [shape: f32[1032,128], index: 2, kind: output, shape index: {}]
  %s3 = sld [smem:[#allocation0]]
  $region41: #{tpu_custom_call.1} parent=0
    _
  %s5 = ssub.s32 1, %s3
  %s6 = scalar_select 0, %s5, %s3
  $region1: #{tpu_custom_call.1} parent=0
    #allocation2 [shape = 'u8[532480]{0}', space=vmem, size = 0x82000, scoped, tag = 'output window, operand 0']
    #allocation3 [shape = 's32[2]{0}', space=sflag, size = 0x8, scoped, tag = 'scoped memory for tpu_custom_call.1']
    %7 = vsyncpa [#allocation3], 0
    %s8 = scalar_lea.sflag [#allocation3], 1
    %9 = vsyncpa %s8, 0
    loop: start=0, step=1, limit=4
    $region2: #{tpu_custom_call.1} parent=1 // loop_pre_header
      _
    $region3: #{tpu_custom_call.1} parent=1 // loop_header
      %s11 = sphi 0, %s15
      %p12 = scmp.ge.s32.totalorder %s11, 4
      %s21 = sphi 0, %s23
      %s24 = sphi 0, %s21
      %s25 = sphi 0, %s24
      %s41 = sphi 0, %s25
      %s45 = sphi 0, %s45
      %s47 = sphi 0, %s45
      %s48 = sphi 0, %s47
      %s62 = sphi 0, %s48
      %s68 = sphi 0, %s70
      %s71 = sphi 0, %s68
      %s72 = sphi 0, %s71
      %s88 = sphi 0, %s72
    $region4: #{tpu_custom_call.1} parent=1 // loop_header_branch
      %14 = sbr.rel (%p12) target = $region8
    $region5: #{tpu_custom_call.1} parent=1 // loop_body
      %s16 = ssub.s32 %s11, 1
      %s17 = ssub.s32 %s11, 2
      %s18 = sadd.s32 %s11, 1
      %s19 = ssub.s32 %s11, %s18
      %p20 = scmp.eq.s32.totalorder %s19, 0
      %s22 = sadd.s32 %s21, 1
      %s23 = scalar_select %p20, %s21, %s22
      %p26 = pneg %p20
      %p27 = scmp.eq.s32.totalorder %s11, 1
      %p28 = por %p26, %p27
      %p29 = scmp.ne.s32.totalorder %s21, %s24
      %p30 = scmp.eq.s32.totalorder %s11, 0
      %p31 = por %p29, %p30
      %p32 = scmp.ne.s32.totalorder %s21, %s24
      %p33 = scmp.eq.s32.totalorder %s16, 1
      %p34 = por %p32, %p33
      %p35 = scmp.ne.s32.totalorder %s24, %s25
      %p36 = scmp.eq.s32.totalorder %s16, 0
      %p37 = por %p35, %p36
      %p38 = scmp.ne.s32.totalorder %s24, %s25
      %p39 = scmp.eq.s32.totalorder %s17, 1
      %p40 = por %p38, %p39
      %p42 = scmp.ne.s32.totalorder %s25, %s41
      %p43 = scmp.eq.s32.totalorder %s17, 0
      %p44 = por %p42, %p43
      %s46 = sadd.s32 %s45, 1
      %p49 = scmp.eq.s32.totalorder %s11, 1
      %p50 = scmp.ne.s32.totalorder %s45, %s47
      %p51 = scmp.eq.s32.totalorder %s11, 0
      %p52 = por %p50, %p51
      %p53 = scmp.ne.s32.totalorder %s45, %s47
      %p54 = scmp.eq.s32.totalorder %s16, 1
      %p55 = por %p53, %p54
      %p56 = scmp.ne.s32.totalorder %s47, %s48
      %p57 = scmp.eq.s32.totalorder %s16, 0
      %p58 = por %p56, %p57
      %p59 = scmp.ne.s32.totalorder %s47, %s48
      %p60 = scmp.eq.s32.totalorder %s17, 1
      %p61 = por %p59, %p60
      %p63 = scmp.ne.s32.totalorder %s48, %s62
      %p64 = scmp.eq.s32.totalorder %s17, 0
      %p65 = por %p63, %p64
      %s66 = ssub.s32 %s11, %s18
      %p67 = scmp.eq.s32.totalorder %s66, 0
      %s69 = sadd.s32 %s68, 1
      %s70 = scalar_select %p67, %s68, %s69
      %p73 = pneg %p67
      %p74 = scmp.eq.s32.totalorder %s11, 1
      %p75 = por %p73, %p74
      %p76 = scmp.ne.s32.totalorder %s68, %s71
      %p77 = scmp.eq.s32.totalorder %s11, 0
      %p78 = por %p76, %p77
      %p79 = scmp.ne.s32.totalorder %s68, %s71
      %p80 = scmp.eq.s32.totalorder %s16, 1
      %p81 = por %p79, %p80
      %p82 = scmp.ne.s32.totalorder %s71, %s72
      %p83 = scmp.eq.s32.totalorder %s16, 0
      %p84 = por %p82, %p83
      %p85 = scmp.ne.s32.totalorder %s71, %s72
      %p86 = scmp.eq.s32.totalorder %s17, 1
      %p87 = por %p85, %p86
      %p89 = scmp.ne.s32.totalorder %s72, %s88
      %p90 = scmp.eq.s32.totalorder %s17, 0
      %p91 = por %p89, %p90
      %p92 = scmp.le.s32.totalorder 1, %s11
      %p93 = scmp.lt.s32.totalorder %s11, 3
      %p94 = pnand %p92, %p93
      %p95 = pneg %p94
      // Predicated region
      $region9: #{tpu_custom_call.1} parent=5 // pred_check
        _
      $region10: #{tpu_custom_call.1} parent=5 // pred_check_branch
        %97 = sbr.rel (%p94) target = $region12
      $region11: #{tpu_custom_call.1} parent=5 // pred_region
        %s98 = ssub.s32 %s11, 1
        // Predicated region
        $region13: #{tpu_custom_call.1} parent=11 // pred_check
          %p99 = pneg %p58
        $region14: #{tpu_custom_call.1} parent=11 // pred_check_branch
          %101 = sbr.rel (%p99) target = $region16
        $region15: #{tpu_custom_call.1} parent=11 // pred_region
          _
        $region16: #{tpu_custom_call.1} parent=11 // pred_fallthru
          _
      $region12: #{tpu_custom_call.1} parent=5 // pred_fallthru
        _
      %p102 = scmp.lt.s32.totalorder %s11, 2
      // Predicated region
      $region17: #{tpu_custom_call.1} parent=5 // pred_check
        %p103 = pneg %p102
      $region18: #{tpu_custom_call.1} parent=5 // pred_check_branch
        %105 = sbr.rel (%p103) target = $region20
      $region19: #{tpu_custom_call.1} parent=5 // pred_region
        // Predicated region
        $region21: #{tpu_custom_call.1} parent=19 // pred_check
          %p106 = pneg %p31
        $region22: #{tpu_custom_call.1} parent=19 // pred_check_branch
          %108 = sbr.rel (%p106) target = $region24
        $region23: #{tpu_custom_call.1} parent=19 // pred_region
          %s109 = smul.u32 65, %s11
          %s110 = ssub.s32 129, %s109
          %p111 = scmp.lt.s32.totalorder %s110, 65
          %s112 = scalar_select %p111, %s110, 65
          %s113 = smul.u32 8, %s112
          %p114 = scmp.lt.s32.totalorder %s109, 128
          %s115 = scalar_select %p114, %s109, 128
          %s116 = smul.addr %s115, 8
          %s117 = scalar_lea.vmem %s0, %s116
          %s118 = smul.u32 65, %s11
          %s119 = ssub.s32 129, %s118
          %p120 = scmp.lt.s32.totalorder %s119, 65
          %s121 = scalar_select %p120, %s119, 65
          %s122 = smul.u32 8, %s121
        $region24: #{tpu_custom_call.1} parent=19 // pred_fallthru
          _
      $region20: #{tpu_custom_call.1} parent=5 // pred_fallthru
        _
      %p123 = scmp.le.s32.totalorder 1, %s11
      %p124 = scmp.lt.s32.totalorder %s11, 3
      %p125 = pnand %p123, %p124
      %p126 = pneg %p125
      // Predicated region
      $region25: #{tpu_custom_call.1} parent=5 // pred_check
        _
      $region26: #{tpu_custom_call.1} parent=5 // pred_check_branch
        %128 = sbr.rel (%p125) target = $region28
      $region27: #{tpu_custom_call.1} parent=5 // pred_region
        %s129 = ssub.s32 %s11, 1
        %s130 = smul.u32 65, %s16
        %s131 = ssub.s32 129, %s130
        %p132 = scmp.lt.s32.totalorder %s131, 65
        %s133 = scalar_select %p132, %s131, 65
        %s134 = smul.u32 8, %s133
        %p135 = scmp.lt.s32.totalorder %s130, 128
        %s136 = scalar_select %p135, %s130, 128
        %s137 = smul.addr %s136, 8
        %s138 = scalar_lea.vmem %s0, %s137
        %p139 = pneg %p37
        %p140 = pneg %p34
        %p141 = pneg %p58
        %p142 = pneg %p55
        %p143 = pneg %p84
        %p144 = pneg %p81
        %s145 = sand.u32 %s71, 1
        %s146 = scalar_lea.sflag [#allocation3], %s145
        %s147 = sand.u32 %s71, 1
        %s148 = smul.addr %s147, 520
        %s149 = scalar_lea.vmem [#allocation2], %s148
        %s150 = smul.u32 65, %s16
        %s151 = ssub.s32 129, %s150
        %p152 = scmp.lt.s32.totalorder %s151, 65
        %s153 = scalar_select %p152, %s151, 65
        %s154 = smul.u32 8, %s153
        %p155 = scmp.lt.s32.totalorder %s150, 128
        %s156 = scalar_select %p155, %s150, 128
        %s157 = smul.addr %s156, 8
        %s158 = scalar_lea.vmem %s0, %s157
        %s159 = smul.u32 65, %s16
        %s160 = ssub.s32 129, %s159
        %p161 = scmp.lt.s32.totalorder %s160, 65
        %s162 = scalar_select %p161, %s160, 65
        %s163 = smul.u32 8, %s162
        %s164 = smul.u32 65, %s16
        %s165 = ssub.s32 129, %s164
        %p166 = scmp.lt.s32.totalorder %s165, 65
        %s167 = scalar_select %p166, %s165, 65
        %s168 = smul.u32 8, %s167
        %v169 = vld [vmem:[%s158] sm:$0xff]
        %v170 = vld [vmem:[%s158 + $0x8] sm:$0xff]
        %v171 = vld [vmem:[%s158 + $0x10] sm:$0xff]
        %v172 = vld [vmem:[%s158 + $0x18] sm:$0xff]
        %v173 = vld [vmem:[%s158 + $0x20] sm:$0xff]
        %v174 = vld [vmem:[%s158 + $0x28] sm:$0xff]
        %v175 = vld [vmem:[%s158 + $0x30] sm:$0xff]
        %v176 = vld [vmem:[%s158 + $0x38] sm:$0xff]
        %v177 = vld [vmem:[%s158 + $0x40] sm:$0xff]
        %v178 = vld [vmem:[%s158 + $0x48] sm:$0xff]
        %v179 = vld [vmem:[%s158 + $0x50] sm:$0xff]
        %v180 = vld [vmem:[%s158 + $0x58] sm:$0xff]
        %v181 = vld [vmem:[%s158 + $0x60] sm:$0xff]
        %v182 = vld [vmem:[%s158 + $0x68] sm:$0xff]
        %v183 = vld [vmem:[%s158 + $0x70] sm:$0xff]
        %v184 = vld [vmem:[%s158 + $0x78] sm:$0xff]
        %v185 = vld [vmem:[%s158 + $0x80] sm:$0xff]
        %v186 = vld [vmem:[%s158 + $0x88] sm:$0xff]
        %v187 = vld [vmem:[%s158 + $0x90] sm:$0xff]
        %v188 = vld [vmem:[%s158 + $0x98] sm:$0xff]
        %v189 = vld [vmem:[%s158 + $0xa0] sm:$0xff]
        %v190 = vld [vmem:[%s158 + $0xa8] sm:$0xff]
        %v191 = vld [vmem:[%s158 + $0xb0] sm:$0xff]
        %v192 = vld [vmem:[%s158 + $0xb8] sm:$0xff]
        %v193 = vld [vmem:[%s158 + $0xc0] sm:$0xff]
        %v194 = vld [vmem:[%s158 + $0xc8] sm:$0xff]
        %v195 = vld [vmem:[%s158 + $0xd0] sm:$0xff]
        %v196 = vld [vmem:[%s158 + $0xd8] sm:$0xff]
        %v197 = vld [vmem:[%s158 + $0xe0] sm:$0xff]
        %v198 = vld [vmem:[%s158 + $0xe8] sm:$0xff]
        %v199 = vld [vmem:[%s158 + $0xf0] sm:$0xff]
        %v200 = vld [vmem:[%s158 + $0xf8] sm:$0xff]
        %v201 = vld [vmem:[%s158 + $0x100] sm:$0xff]
        %v202 = vld [vmem:[%s158 + $0x108] sm:$0xff]
        %v203 = vld [vmem:[%s158 + $0x110] sm:$0xff]
        %v204 = vld [vmem:[%s158 + $0x118] sm:$0xff]
        %v205 = vld [vmem:[%s158 + $0x120] sm:$0xff]
        %v206 = vld [vmem:[%s158 + $0x128] sm:$0xff]
        %v207 = vld [vmem:[%s158 + $0x130] sm:$0xff]
        %v208 = vld [vmem:[%s158 + $0x138] sm:$0xff]
        %v209 = vld [vmem:[%s158 + $0x140] sm:$0xff]
        %v210 = vld [vmem:[%s158 + $0x148] sm:$0xff]
        %v211 = vld [vmem:[%s158 + $0x150] sm:$0xff]
        %v212 = vld [vmem:[%s158 + $0x158] sm:$0xff]
        %v213 = vld [vmem:[%s158 + $0x160] sm:$0xff]
        %v214 = vld [vmem:[%s158 + $0x168] sm:$0xff]
        %v215 = vld [vmem:[%s158 + $0x170] sm:$0xff]
        %v216 = vld [vmem:[%s158 + $0x178] sm:$0xff]
        %v217 = vld [vmem:[%s158 + $0x180] sm:$0xff]
        %v218 = vld [vmem:[%s158 + $0x188] sm:$0xff]
        %v219 = vld [vmem:[%s158 + $0x190] sm:$0xff]
        %v220 = vld [vmem:[%s158 + $0x198] sm:$0xff]
        %v221 = vld [vmem:[%s158 + $0x1a0] sm:$0xff]
        %v222 = vld [vmem:[%s158 + $0x1a8] sm:$0xff]
        %v223 = vld [vmem:[%s158 + $0x1b0] sm:$0xff]
        %v224 = vld [vmem:[%s158 + $0x1b8] sm:$0xff]
        %v225 = vld [vmem:[%s158 + $0x1c0] sm:$0xff]
        %v226 = vld [vmem:[%s158 + $0x1c8] sm:$0xff]
        %v227 = vld [vmem:[%s158 + $0x1d0] sm:$0xff]
        %v228 = vld [vmem:[%s158 + $0x1d8] sm:$0xff]
        %v229 = vld [vmem:[%s158 + $0x1e0] sm:$0xff]
        %v230 = vld [vmem:[%s158 + $0x1e8] sm:$0xff]
        %v231 = vld [vmem:[%s158 + $0x1f0] sm:$0xff]
        %v232 = vld [vmem:[%s158 + $0x1f8] sm:$0xff]
        %v233 = vld [vmem:[%s158 + $0x200] sm:$0xff]
        %v234 = vld [vmem:[%s1 + $0x4] sm:$0x1]
        %v235 = vld [vmem:[%s1 + $0x5] sm:$0x1]
        %v236 = vld [vmem:[%s1] sm:$0x1]
        %238 = vset.pattern.permute.xlu0 0
        %239 = vperm.xlu0 %238, %v169
        %v240 = vpop.permute.xlu0 %239
        %243 = vset.pattern.permute.xlu0 0
        %244 = vperm.xlu0 %243, %v170
        %v245 = vpop.permute.xlu0 %244
        %248 = vset.pattern.permute.xlu0 0
        %249 = vperm.xlu0 %248, %v171
        %v250 = vpop.permute.xlu0 %249
        %253 = vset.pattern.permute.xlu0 0
        %254 = vperm.xlu0 %253, %v172
        %v255 = vpop.permute.xlu0 %254
        %258 = vset.pattern.permute.xlu0 0
        %259 = vperm.xlu0 %258, %v173
        %v260 = vpop.permute.xlu0 %259
        %263 = vset.pattern.permute.xlu0 0
        %264 = vperm.xlu0 %263, %v174
        %v265 = vpop.permute.xlu0 %264
        %268 = vset.pattern.permute.xlu0 0
        %269 = vperm.xlu0 %268, %v175
        %v270 = vpop.permute.xlu0 %269
        %273 = vset.pattern.permute.xlu0 0
        %274 = vperm.xlu0 %273, %v176
        %v275 = vpop.permute.xlu0 %274
        %278 = vset.pattern.permute.xlu0 0
        %279 = vperm.xlu0 %278, %v177
        %v280 = vpop.permute.xlu0 %279
        %283 = vset.pattern.permute.xlu0 0
        %284 = vperm.xlu0 %283, %v178
        %v285 = vpop.permute.xlu0 %284
        %288 = vset.pattern.permute.xlu0 0
        %289 = vperm.xlu0 %288, %v179
        %v290 = vpop.permute.xlu0 %289
        %293 = vset.pattern.permute.xlu0 0
        %294 = vperm.xlu0 %293, %v180
        %v295 = vpop.permute.xlu0 %294
        %298 = vset.pattern.permute.xlu0 0
        %299 = vperm.xlu0 %298, %v181
        %v300 = vpop.permute.xlu0 %299
        %303 = vset.pattern.permute.xlu0 0
        %304 = vperm.xlu0 %303, %v182
        %v305 = vpop.permute.xlu0 %304
        %308 = vset.pattern.permute.xlu0 0
        %309 = vperm.xlu0 %308, %v183
        %v310 = vpop.permute.xlu0 %309
        %313 = vset.pattern.permute.xlu0 0
        %314 = vperm.xlu0 %313, %v184
        %v315 = vpop.permute.xlu0 %314
        %318 = vset.pattern.permute.xlu0 0
        %319 = vperm.xlu0 %318, %v185
        %v320 = vpop.permute.xlu0 %319
        %323 = vset.pattern.permute.xlu0 0
        %324 = vperm.xlu0 %323, %v186
        %v325 = vpop.permute.xlu0 %324
        %328 = vset.pattern.permute.xlu0 0
        %329 = vperm.xlu0 %328, %v187
        %v330 = vpop.permute.xlu0 %329
        %333 = vset.pattern.permute.xlu0 0
        %334 = vperm.xlu0 %333, %v188
        %v335 = vpop.permute.xlu0 %334
        %338 = vset.pattern.permute.xlu0 0
        %339 = vperm.xlu0 %338, %v189
        %v340 = vpop.permute.xlu0 %339
        %343 = vset.pattern.permute.xlu0 0
        %344 = vperm.xlu0 %343, %v190
        %v345 = vpop.permute.xlu0 %344
        %348 = vset.pattern.permute.xlu0 0
        %349 = vperm.xlu0 %348, %v191
        %v350 = vpop.permute.xlu0 %349
        %353 = vset.pattern.permute.xlu0 0
        %354 = vperm.xlu0 %353, %v192
        %v355 = vpop.permute.xlu0 %354
        %358 = vset.pattern.permute.xlu0 0
        %359 = vperm.xlu0 %358, %v193
        %v360 = vpop.permute.xlu0 %359
        %363 = vset.pattern.permute.xlu0 0
        %364 = vperm.xlu0 %363, %v194
        %v365 = vpop.permute.xlu0 %364
        %368 = vset.pattern.permute.xlu0 0
        %369 = vperm.xlu0 %368, %v195
        %v370 = vpop.permute.xlu0 %369
        %373 = vset.pattern.permute.xlu0 0
        %374 = vperm.xlu0 %373, %v196
        %v375 = vpop.permute.xlu0 %374
        %378 = vset.pattern.permute.xlu0 0
        %379 = vperm.xlu0 %378, %v197
        %v380 = vpop.permute.xlu0 %379
        %383 = vset.pattern.permute.xlu0 0
        %384 = vperm.xlu0 %383, %v198
        %v385 = vpop.permute.xlu0 %384
        %388 = vset.pattern.permute.xlu0 0
        %389 = vperm.xlu0 %388, %v199
        %v390 = vpop.permute.xlu0 %389
        %393 = vset.pattern.permute.xlu0 0
        %394 = vperm.xlu0 %393, %v200
        %v395 = vpop.permute.xlu0 %394
        %398 = vset.pattern.permute.xlu0 0
        %399 = vperm.xlu0 %398, %v201
        %v400 = vpop.permute.xlu0 %399
        %403 = vset.pattern.permute.xlu0 0
        %404 = vperm.xlu0 %403, %v202
        %v405 = vpop.permute.xlu0 %404
        %408 = vset.pattern.permute.xlu0 0
        %409 = vperm.xlu0 %408, %v203
        %v410 = vpop.permute.xlu0 %409
        %413 = vset.pattern.permute.xlu0 0
        %414 = vperm.xlu0 %413, %v204
        %v415 = vpop.permute.xlu0 %414
        %418 = vset.pattern.permute.xlu0 0
        %419 = vperm.xlu0 %418, %v205
        %v420 = vpop.permute.xlu0 %419
        %423 = vset.pattern.permute.xlu0 0
        %424 = vperm.xlu0 %423, %v206
        %v425 = vpop.permute.xlu0 %424
        %428 = vset.pattern.permute.xlu0 0
        %429 = vperm.xlu0 %428, %v207
        %v430 = vpop.permute.xlu0 %429
        %433 = vset.pattern.permute.xlu0 0
        %434 = vperm.xlu0 %433, %v208
        %v435 = vpop.permute.xlu0 %434
        %438 = vset.pattern.permute.xlu0 0
        %439 = vperm.xlu0 %438, %v209
        %v440 = vpop.permute.xlu0 %439
        %443 = vset.pattern.permute.xlu0 0
        %444 = vperm.xlu0 %443, %v210
        %v445 = vpop.permute.xlu0 %444
        %448 = vset.pattern.permute.xlu0 0
        %449 = vperm.xlu0 %448, %v211
        %v450 = vpop.permute.xlu0 %449
        %453 = vset.pattern.permute.xlu0 0
        %454 = vperm.xlu0 %453, %v212
        %v455 = vpop.permute.xlu0 %454
        %458 = vset.pattern.permute.xlu0 0
        %459 = vperm.xlu0 %458, %v213
        %v460 = vpop.permute.xlu0 %459
        %463 = vset.pattern.permute.xlu0 0
        %464 = vperm.xlu0 %463, %v214
        %v465 = vpop.permute.xlu0 %464
        %468 = vset.pattern.permute.xlu0 0
        %469 = vperm.xlu0 %468, %v215
        %v470 = vpop.permute.xlu0 %469
        %473 = vset.pattern.permute.xlu0 0
        %474 = vperm.xlu0 %473, %v216
        %v475 = vpop.permute.xlu0 %474
        %478 = vset.pattern.permute.xlu0 0
        %479 = vperm.xlu0 %478, %v217
        %v480 = vpop.permute.xlu0 %479
        %483 = vset.pattern.permute.xlu0 0
        %484 = vperm.xlu0 %483, %v218
        %v485 = vpop.permute.xlu0 %484
        %488 = vset.pattern.permute.xlu0 0
        %489 = vperm.xlu0 %488, %v219
        %v490 = vpop.permute.xlu0 %489
        %493 = vset.pattern.permute.xlu0 0
        %494 = vperm.xlu0 %493, %v220
        %v495 = vpop.permute.xlu0 %494
        %498 = vset.pattern.permute.xlu0 0
        %499 = vperm.xlu0 %498, %v221
        %v500 = vpop.permute.xlu0 %499
        %503 = vset.pattern.permute.xlu0 0
        %504 = vperm.xlu0 %503, %v222
        %v505 = vpop.permute.xlu0 %504
        %508 = vset.pattern.permute.xlu0 0
        %509 = vperm.xlu0 %508, %v223
        %v510 = vpop.permute.xlu0 %509
        %513 = vset.pattern.permute.xlu0 0
        %514 = vperm.xlu0 %513, %v224
        %v515 = vpop.permute.xlu0 %514
        %518 = vset.pattern.permute.xlu0 0
        %519 = vperm.xlu0 %518, %v225
        %v520 = vpop.permute.xlu0 %519
        %523 = vset.pattern.permute.xlu0 0
        %524 = vperm.xlu0 %523, %v226
        %v525 = vpop.permute.xlu0 %524
        %528 = vset.pattern.permute.xlu0 0
        %529 = vperm.xlu0 %528, %v227
        %v530 = vpop.permute.xlu0 %529
        %533 = vset.pattern.permute.xlu0 0
        %534 = vperm.xlu0 %533, %v228
        %v535 = vpop.permute.xlu0 %534
        %538 = vset.pattern.permute.xlu0 0
        %539 = vperm.xlu0 %538, %v229
        %v540 = vpop.permute.xlu0 %539
        %543 = vset.pattern.permute.xlu0 0
        %544 = vperm.xlu0 %543, %v230
        %v545 = vpop.permute.xlu0 %544
        %548 = vset.pattern.permute.xlu0 0
        %549 = vperm.xlu0 %548, %v231
        %v550 = vpop.permute.xlu0 %549
        %553 = vset.pattern.permute.xlu0 0
        %554 = vperm.xlu0 %553, %v232
        %v555 = vpop.permute.xlu0 %554
        %558 = vset.pattern.permute.xlu0 0
        %559 = vperm.xlu0 %558, %v233
        %v560 = vpop.permute.xlu0 %559
        %v562 = vperm.slane %v236, 0
        %v563 = vmul.f32 %v240, %v562
        %v564 = vmul.f32 %v245, %v562
        %v565 = vmul.f32 %v250, %v562
        %v566 = vmul.f32 %v255, %v562
        %v567 = vmul.f32 %v260, %v562
        %v568 = vmul.f32 %v265, %v562
        %v569 = vmul.f32 %v270, %v562
        %v570 = vmul.f32 %v275, %v562
        %v571 = vmul.f32 %v280, %v562
        %v572 = vmul.f32 %v285, %v562
        %v573 = vmul.f32 %v290, %v562
        %v574 = vmul.f32 %v295, %v562
        %v575 = vmul.f32 %v300, %v562
        %v576 = vmul.f32 %v305, %v562
        %v577 = vmul.f32 %v310, %v562
        %v578 = vmul.f32 %v315, %v562
        %v579 = vmul.f32 %v320, %v562
        %v580 = vmul.f32 %v325, %v562
        %v581 = vmul.f32 %v330, %v562
        %v582 = vmul.f32 %v335, %v562
        %v583 = vmul.f32 %v340, %v562
        %v584 = vmul.f32 %v345, %v562
        %v585 = vmul.f32 %v350, %v562
        %v586 = vmul.f32 %v355, %v562
        %v587 = vmul.f32 %v360, %v562
        %v588 = vmul.f32 %v365, %v562
        %v589 = vmul.f32 %v370, %v562
        %v590 = vmul.f32 %v375, %v562
        %v591 = vmul.f32 %v380, %v562
        %v592 = vmul.f32 %v385, %v562
        %v593 = vmul.f32 %v390, %v562
        %v594 = vmul.f32 %v395, %v562
        %v595 = vmul.f32 %v400, %v562
        %v596 = vmul.f32 %v405, %v562
        %v597 = vmul.f32 %v410, %v562
        %v598 = vmul.f32 %v415, %v562
        %v599 = vmul.f32 %v420, %v562
        %v600 = vmul.f32 %v425, %v562
        %v601 = vmul.f32 %v430, %v562
        %v602 = vmul.f32 %v435, %v562
        %v603 = vmul.f32 %v440, %v562
        %v604 = vmul.f32 %v445, %v562
        %v605 = vmul.f32 %v450, %v562
        %v606 = vmul.f32 %v455, %v562
        %v607 = vmul.f32 %v460, %v562
        %v608 = vmul.f32 %v465, %v562
        %v609 = vmul.f32 %v470, %v562
        %v610 = vmul.f32 %v475, %v562
        %v611 = vmul.f32 %v480, %v562
        %v612 = vmul.f32 %v485, %v562
        %v613 = vmul.f32 %v490, %v562
        %v614 = vmul.f32 %v495, %v562
        %v615 = vmul.f32 %v500, %v562
        %v616 = vmul.f32 %v505, %v562
        %v617 = vmul.f32 %v510, %v562
        %v618 = vmul.f32 %v515, %v562
        %v619 = vmul.f32 %v520, %v562
        %v620 = vmul.f32 %v525, %v562
        %v621 = vmul.f32 %v530, %v562
        %v622 = vmul.f32 %v535, %v562
        %v623 = vmul.f32 %v540, %v562
        %v624 = vmul.f32 %v545, %v562
        %v625 = vmul.f32 %v550, %v562
        %v626 = vmul.f32 %v555, %v562
        %v627 = vmul.f32 %v560, %v562
        %v628 = vperm.slane %v234, 0
        %v629 = vadd.f32 %v563, %v628
        %v630 = vadd.f32 %v564, %v628
        %v631 = vadd.f32 %v565, %v628
        %v632 = vadd.f32 %v566, %v628
        %v633 = vadd.f32 %v567, %v628
        %v634 = vadd.f32 %v568, %v628
        %v635 = vadd.f32 %v569, %v628
        %v636 = vadd.f32 %v570, %v628
        %v637 = vadd.f32 %v571, %v628
        %v638 = vadd.f32 %v572, %v628
        %v639 = vadd.f32 %v573, %v628
        %v640 = vadd.f32 %v574, %v628
        %v641 = vadd.f32 %v575, %v628
        %v642 = vadd.f32 %v576, %v628
        %v643 = vadd.f32 %v577, %v628
        %v644 = vadd.f32 %v578, %v628
        %v645 = vadd.f32 %v579, %v628
        %v646 = vadd.f32 %v580, %v628
        %v647 = vadd.f32 %v581, %v628
        %v648 = vadd.f32 %v582, %v628
        %v649 = vadd.f32 %v583, %v628
        %v650 = vadd.f32 %v584, %v628
        %v651 = vadd.f32 %v585, %v628
        %v652 = vadd.f32 %v586, %v628
        %v653 = vadd.f32 %v587, %v628
        %v654 = vadd.f32 %v588, %v628
        %v655 = vadd.f32 %v589, %v628
        %v656 = vadd.f32 %v590, %v628
        %v657 = vadd.f32 %v591, %v628
        %v658 = vadd.f32 %v592, %v628
        %v659 = vadd.f32 %v593, %v628
        %v660 = vadd.f32 %v594, %v628
        %v661 = vadd.f32 %v595, %v628
        %v662 = vadd.f32 %v596, %v628
        %v663 = vadd.f32 %v597, %v628
        %v664 = vadd.f32 %v598, %v628
        %v665 = vadd.f32 %v599, %v628
        %v666 = vadd.f32 %v600, %v628
        %v667 = vadd.f32 %v601, %v628
        %v668 = vadd.f32 %v602, %v628
        %v669 = vadd.f32 %v603, %v628
        %v670 = vadd.f32 %v604, %v628
        %v671 = vadd.f32 %v605, %v628
        %v672 = vadd.f32 %v606, %v628
        %v673 = vadd.f32 %v607, %v628
        %v674 = vadd.f32 %v608, %v628
        %v675 = vadd.f32 %v609, %v628
        %v676 = vadd.f32 %v610, %v628
        %v677 = vadd.f32 %v611, %v628
        %v678 = vadd.f32 %v612, %v628
        %v679 = vadd.f32 %v613, %v628
        %v680 = vadd.f32 %v614, %v628
        %v681 = vadd.f32 %v615, %v628
        %v682 = vadd.f32 %v616, %v628
        %v683 = vadd.f32 %v617, %v628
        %v684 = vadd.f32 %v618, %v628
        %v685 = vadd.f32 %v619, %v628
        %v686 = vadd.f32 %v620, %v628
        %v687 = vadd.f32 %v621, %v628
        %v688 = vadd.f32 %v622, %v628
        %v689 = vadd.f32 %v623, %v628
        %v690 = vadd.f32 %v624, %v628
        %v691 = vadd.f32 %v625, %v628
        %v692 = vadd.f32 %v626, %v628
        %v693 = vadd.f32 %v627, %v628
        %v694 = vld [vmem:[%s1 + $0x1] sm:$0x1]
        %695 = vset.pattern.permute.xlu0 1
        %696 = vperm.xlu0 %695, %v169
        %v697 = vpop.permute.xlu0 %696
        %699 = vset.pattern.permute.xlu0 1
        %700 = vperm.xlu0 %699, %v170
        %v701 = vpop.permute.xlu0 %700
        %703 = vset.pattern.permute.xlu0 1
        %704 = vperm.xlu0 %703, %v171
        %v705 = vpop.permute.xlu0 %704
        %707 = vset.pattern.permute.xlu0 1
        %708 = vperm.xlu0 %707, %v172
        %v709 = vpop.permute.xlu0 %708
        %711 = vset.pattern.permute.xlu0 1
        %712 = vperm.xlu0 %711, %v173
        %v713 = vpop.permute.xlu0 %712
        %715 = vset.pattern.permute.xlu0 1
        %716 = vperm.xlu0 %715, %v174
        %v717 = vpop.permute.xlu0 %716
        %719 = vset.pattern.permute.xlu0 1
        %720 = vperm.xlu0 %719, %v175
        %v721 = vpop.permute.xlu0 %720
        %723 = vset.pattern.permute.xlu0 1
        %724 = vperm.xlu0 %723, %v176
        %v725 = vpop.permute.xlu0 %724
        %727 = vset.pattern.permute.xlu0 1
        %728 = vperm.xlu0 %727, %v177
        %v729 = vpop.permute.xlu0 %728
        %731 = vset.pattern.permute.xlu0 1
        %732 = vperm.xlu0 %731, %v178
        %v733 = vpop.permute.xlu0 %732
        %735 = vset.pattern.permute.xlu0 1
        %736 = vperm.xlu0 %735, %v179
        %v737 = vpop.permute.xlu0 %736
        %739 = vset.pattern.permute.xlu0 1
        %740 = vperm.xlu0 %739, %v180
        %v741 = vpop.permute.xlu0 %740
        %743 = vset.pattern.permute.xlu0 1
        %744 = vperm.xlu0 %743, %v181
        %v745 = vpop.permute.xlu0 %744
        %747 = vset.pattern.permute.xlu0 1
        %748 = vperm.xlu0 %747, %v182
        %v749 = vpop.permute.xlu0 %748
        %751 = vset.pattern.permute.xlu0 1
        %752 = vperm.xlu0 %751, %v183
        %v753 = vpop.permute.xlu0 %752
        %755 = vset.pattern.permute.xlu0 1
        %756 = vperm.xlu0 %755, %v184
        %v757 = vpop.permute.xlu0 %756
        %759 = vset.pattern.permute.xlu0 1
        %760 = vperm.xlu0 %759, %v185
        %v761 = vpop.permute.xlu0 %760
        %763 = vset.pattern.permute.xlu0 1
        %764 = vperm.xlu0 %763, %v186
        %v765 = vpop.permute.xlu0 %764
        %767 = vset.pattern.permute.xlu0 1
        %768 = vperm.xlu0 %767, %v187
        %v769 = vpop.permute.xlu0 %768
        %771 = vset.pattern.permute.xlu0 1
        %772 = vperm.xlu0 %771, %v188
        %v773 = vpop.permute.xlu0 %772
        %775 = vset.pattern.permute.xlu0 1
        %776 = vperm.xlu0 %775, %v189
        %v777 = vpop.permute.xlu0 %776
        %779 = vset.pattern.permute.xlu0 1
        %780 = vperm.xlu0 %779, %v190
        %v781 = vpop.permute.xlu0 %780
        %783 = vset.pattern.permute.xlu0 1
        %784 = vperm.xlu0 %783, %v191
        %v785 = vpop.permute.xlu0 %784
        %787 = vset.pattern.permute.xlu0 1
        %788 = vperm.xlu0 %787, %v192
        %v789 = vpop.permute.xlu0 %788
        %791 = vset.pattern.permute.xlu0 1
        %792 = vperm.xlu0 %791, %v193
        %v793 = vpop.permute.xlu0 %792
        %795 = vset.pattern.permute.xlu0 1
        %796 = vperm.xlu0 %795, %v194
        %v797 = vpop.permute.xlu0 %796
        %799 = vset.pattern.permute.xlu0 1
        %800 = vperm.xlu0 %799, %v195
        %v801 = vpop.permute.xlu0 %800
        %803 = vset.pattern.permute.xlu0 1
        %804 = vperm.xlu0 %803, %v196
        %v805 = vpop.permute.xlu0 %804
        %807 = vset.pattern.permute.xlu0 1
        %808 = vperm.xlu0 %807, %v197
        %v809 = vpop.permute.xlu0 %808
        %811 = vset.pattern.permute.xlu0 1
        %812 = vperm.xlu0 %811, %v198
        %v813 = vpop.permute.xlu0 %812
        %815 = vset.pattern.permute.xlu0 1
        %816 = vperm.xlu0 %815, %v199
        %v817 = vpop.permute.xlu0 %816
        %819 = vset.pattern.permute.xlu0 1
        %820 = vperm.xlu0 %819, %v200
        %v821 = vpop.permute.xlu0 %820
        %823 = vset.pattern.permute.xlu0 1
        %824 = vperm.xlu0 %823, %v201
        %v825 = vpop.permute.xlu0 %824
        %827 = vset.pattern.permute.xlu0 1
        %828 = vperm.xlu0 %827, %v202
        %v829 = vpop.permute.xlu0 %828
        %831 = vset.pattern.permute.xlu0 1
        %832 = vperm.xlu0 %831, %v203
        %v833 = vpop.permute.xlu0 %832
        %835 = vset.pattern.permute.xlu0 1
        %836 = vperm.xlu0 %835, %v204
        %v837 = vpop.permute.xlu0 %836
        %839 = vset.pattern.permute.xlu0 1
        %840 = vperm.xlu0 %839, %v205
        %v841 = vpop.permute.xlu0 %840
        %843 = vset.pattern.permute.xlu0 1
        %844 = vperm.xlu0 %843, %v206
        %v845 = vpop.permute.xlu0 %844
        %847 = vset.pattern.permute.xlu0 1
        %848 = vperm.xlu0 %847, %v207
        %v849 = vpop.permute.xlu0 %848
        %851 = vset.pattern.permute.xlu0 1
        %852 = vperm.xlu0 %851, %v208
        %v853 = vpop.permute.xlu0 %852
        %855 = vset.pattern.permute.xlu0 1
        %856 = vperm.xlu0 %855, %v209
        %v857 = vpop.permute.xlu0 %856
        %859 = vset.pattern.permute.xlu0 1
        %860 = vperm.xlu0 %859, %v210
        %v861 = vpop.permute.xlu0 %860
        %863 = vset.pattern.permute.xlu0 1
        %864 = vperm.xlu0 %863, %v211
        %v865 = vpop.permute.xlu0 %864
        %867 = vset.pattern.permute.xlu0 1
        %868 = vperm.xlu0 %867, %v212
        %v869 = vpop.permute.xlu0 %868
        %871 = vset.pattern.permute.xlu0 1
        %872 = vperm.xlu0 %871, %v213
        %v873 = vpop.permute.xlu0 %872
        %875 = vset.pattern.permute.xlu0 1
        %876 = vperm.xlu0 %875, %v214
        %v877 = vpop.permute.xlu0 %876
        %879 = vset.pattern.permute.xlu0 1
        %880 = vperm.xlu0 %879, %v215
        %v881 = vpop.permute.xlu0 %880
        %883 = vset.pattern.permute.xlu0 1
        %884 = vperm.xlu0 %883, %v216
        %v885 = vpop.permute.xlu0 %884
        %887 = vset.pattern.permute.xlu0 1
        %888 = vperm.xlu0 %887, %v217
        %v889 = vpop.permute.xlu0 %888
        %891 = vset.pattern.permute.xlu0 1
        %892 = vperm.xlu0 %891, %v218
        %v893 = vpop.permute.xlu0 %892
        %895 = vset.pattern.permute.xlu0 1
        %896 = vperm.xlu0 %895, %v219
        %v897 = vpop.permute.xlu0 %896
        %899 = vset.pattern.permute.xlu0 1
        %900 = vperm.xlu0 %899, %v220
        %v901 = vpop.permute.xlu0 %900
        %903 = vset.pattern.permute.xlu0 1
        %904 = vperm.xlu0 %903, %v221
        %v905 = vpop.permute.xlu0 %904
        %907 = vset.pattern.permute.xlu0 1
        %908 = vperm.xlu0 %907, %v222
        %v909 = vpop.permute.xlu0 %908
        %911 = vset.pattern.permute.xlu0 1
        %912 = vperm.xlu0 %911, %v223
        %v913 = vpop.permute.xlu0 %912
        %915 = vset.pattern.permute.xlu0 1
        %916 = vperm.xlu0 %915, %v224
        %v917 = vpop.permute.xlu0 %916
        %919 = vset.pattern.permute.xlu0 1
        %920 = vperm.xlu0 %919, %v225
        %v921 = vpop.permute.xlu0 %920
        %923 = vset.pattern.permute.xlu0 1
        %924 = vperm.xlu0 %923, %v226
        %v925 = vpop.permute.xlu0 %924
        %927 = vset.pattern.permute.xlu0 1
        %928 = vperm.xlu0 %927, %v227
        %v929 = vpop.permute.xlu0 %928
        %931 = vset.pattern.permute.xlu0 1
        %932 = vperm.xlu0 %931, %v228
        %v933 = vpop.permute.xlu0 %932
        %935 = vset.pattern.permute.xlu0 1
        %936 = vperm.xlu0 %935, %v229
        %v937 = vpop.permute.xlu0 %936
        %939 = vset.pattern.permute.xlu0 1
        %940 = vperm.xlu0 %939, %v230
        %v941 = vpop.permute.xlu0 %940
        %943 = vset.pattern.permute.xlu0 1
        %944 = vperm.xlu0 %943, %v231
        %v945 = vpop.permute.xlu0 %944
        %947 = vset.pattern.permute.xlu0 1
        %948 = vperm.xlu0 %947, %v232
        %v949 = vpop.permute.xlu0 %948
        %951 = vset.pattern.permute.xlu0 1
        %952 = vperm.xlu0 %951, %v233
        %v953 = vpop.permute.xlu0 %952
        %v955 = vperm.slane %v694, 0
        %v956 = vmul.f32 %v697, %v955
        %v957 = vmul.f32 %v701, %v955
        %v958 = vmul.f32 %v705, %v955
        %v959 = vmul.f32 %v709, %v955
        %v960 = vmul.f32 %v713, %v955
        %v961 = vmul.f32 %v717, %v955
        %v962 = vmul.f32 %v721, %v955
        %v963 = vmul.f32 %v725, %v955
        %v964 = vmul.f32 %v729, %v955
        %v965 = vmul.f32 %v733, %v955
        %v966 = vmul.f32 %v737, %v955
        %v967 = vmul.f32 %v741, %v955
        %v968 = vmul.f32 %v745, %v955
        %v969 = vmul.f32 %v749, %v955
        %v970 = vmul.f32 %v753, %v955
        %v971 = vmul.f32 %v757, %v955
        %v972 = vmul.f32 %v761, %v955
        %v973 = vmul.f32 %v765, %v955
        %v974 = vmul.f32 %v769, %v955
        %v975 = vmul.f32 %v773, %v955
        %v976 = vmul.f32 %v777, %v955
        %v977 = vmul.f32 %v781, %v955
        %v978 = vmul.f32 %v785, %v955
        %v979 = vmul.f32 %v789, %v955
        %v980 = vmul.f32 %v793, %v955
        %v981 = vmul.f32 %v797, %v955
        %v982 = vmul.f32 %v801, %v955
        %v983 = vmul.f32 %v805, %v955
        %v984 = vmul.f32 %v809, %v955
        %v985 = vmul.f32 %v813, %v955
        %v986 = vmul.f32 %v817, %v955
        %v987 = vmul.f32 %v821, %v955
        %v988 = vmul.f32 %v825, %v955
        %v989 = vmul.f32 %v829, %v955
        %v990 = vmul.f32 %v833, %v955
        %v991 = vmul.f32 %v837, %v955
        %v992 = vmul.f32 %v841, %v955
        %v993 = vmul.f32 %v845, %v955
        %v994 = vmul.f32 %v849, %v955
        %v995 = vmul.f32 %v853, %v955
        %v996 = vmul.f32 %v857, %v955
        %v997 = vmul.f32 %v861, %v955
        %v998 = vmul.f32 %v865, %v955
        %v999 = vmul.f32 %v869, %v955
        %v1000 = vmul.f32 %v873, %v955
        %v1001 = vmul.f32 %v877, %v955
        %v1002 = vmul.f32 %v881, %v955
        %v1003 = vmul.f32 %v885, %v955
        %v1004 = vmul.f32 %v889, %v955
        %v1005 = vmul.f32 %v893, %v955
        %v1006 = vmul.f32 %v897, %v955
        %v1007 = vmul.f32 %v901, %v955
        %v1008 = vmul.f32 %v905, %v955
        %v1009 = vmul.f32 %v909, %v955
        %v1010 = vmul.f32 %v913, %v955
        %v1011 = vmul.f32 %v917, %v955
        %v1012 = vmul.f32 %v921, %v955
        %v1013 = vmul.f32 %v925, %v955
        %v1014 = vmul.f32 %v929, %v955
        %v1015 = vmul.f32 %v933, %v955
        %v1016 = vmul.f32 %v937, %v955
        %v1017 = vmul.f32 %v941, %v955
        %v1018 = vmul.f32 %v945, %v955
        %v1019 = vmul.f32 %v949, %v955
        %v1020 = vmul.f32 %v953, %v955
        %v1021 = vadd.f32 %v629, %v956
        %v1022 = vadd.f32 %v630, %v957
        %v1023 = vadd.f32 %v631, %v958
        %v1024 = vadd.f32 %v632, %v959
        %v1025 = vadd.f32 %v633, %v960
        %v1026 = vadd.f32 %v634, %v961
        %v1027 = vadd.f32 %v635, %v962
        %v1028 = vadd.f32 %v636, %v963
        %v1029 = vadd.f32 %v637, %v964
        %v1030 = vadd.f32 %v638, %v965
        %v1031 = vadd.f32 %v639, %v966
        %v1032 = vadd.f32 %v640, %v967
        %v1033 = vadd.f32 %v641, %v968
        %v1034 = vadd.f32 %v642, %v969
        %v1035 = vadd.f32 %v643, %v970
        %v1036 = vadd.f32 %v644, %v971
        %v1037 = vadd.f32 %v645, %v972
        %v1038 = vadd.f32 %v646, %v973
        %v1039 = vadd.f32 %v647, %v974
        %v1040 = vadd.f32 %v648, %v975
        %v1041 = vadd.f32 %v649, %v976
        %v1042 = vadd.f32 %v650, %v977
        %v1043 = vadd.f32 %v651, %v978
        %v1044 = vadd.f32 %v652, %v979
        %v1045 = vadd.f32 %v653, %v980
        %v1046 = vadd.f32 %v654, %v981
        %v1047 = vadd.f32 %v655, %v982
        %v1048 = vadd.f32 %v656, %v983
        %v1049 = vadd.f32 %v657, %v984
        %v1050 = vadd.f32 %v658, %v985
        %v1051 = vadd.f32 %v659, %v986
        %v1052 = vadd.f32 %v660, %v987
        %v1053 = vadd.f32 %v661, %v988
        %v1054 = vadd.f32 %v662, %v989
        %v1055 = vadd.f32 %v663, %v990
        %v1056 = vadd.f32 %v664, %v991
        %v1057 = vadd.f32 %v665, %v992
        %v1058 = vadd.f32 %v666, %v993
        %v1059 = vadd.f32 %v667, %v994
        %v1060 = vadd.f32 %v668, %v995
        %v1061 = vadd.f32 %v669, %v996
        %v1062 = vadd.f32 %v670, %v997
        %v1063 = vadd.f32 %v671, %v998
        %v1064 = vadd.f32 %v672, %v999
        %v1065 = vadd.f32 %v673, %v1000
        %v1066 = vadd.f32 %v674, %v1001
        %v1067 = vadd.f32 %v675, %v1002
        %v1068 = vadd.f32 %v676, %v1003
        %v1069 = vadd.f32 %v677, %v1004
        %v1070 = vadd.f32 %v678, %v1005
        %v1071 = vadd.f32 %v679, %v1006
        %v1072 = vadd.f32 %v680, %v1007
        %v1073 = vadd.f32 %v681, %v1008
        %v1074 = vadd.f32 %v682, %v1009
        %v1075 = vadd.f32 %v683, %v1010
        %v1076 = vadd.f32 %v684, %v1011
        %v1077 = vadd.f32 %v685, %v1012
        %v1078 = vadd.f32 %v686, %v1013
        %v1079 = vadd.f32 %v687, %v1014
        %v1080 = vadd.f32 %v688, %v1015
        %v1081 = vadd.f32 %v689, %v1016
        %v1082 = vadd.f32 %v690, %v1017
        %v1083 = vadd.f32 %v691, %v1018
        %v1084 = vadd.f32 %v692, %v1019
        %v1085 = vadd.f32 %v693, %v1020
        %v1086 = vld [vmem:[%s1 + $0x2] sm:$0x1]
        %1087 = vset.pattern.permute.xlu0 2
        %1088 = vperm.xlu0 %1087, %v169
        %v1089 = vpop.permute.xlu0 %1088
        %1091 = vset.pattern.permute.xlu0 2
        %1092 = vperm.xlu0 %1091, %v170
        %v1093 = vpop.permute.xlu0 %1092
        %1095 = vset.pattern.permute.xlu0 2
        %1096 = vperm.xlu0 %1095, %v171
        %v1097 = vpop.permute.xlu0 %1096
        %1099 = vset.pattern.permute.xlu0 2
        %1100 = vperm.xlu0 %1099, %v172
        %v1101 = vpop.permute.xlu0 %1100
        %1103 = vset.pattern.permute.xlu0 2
        %1104 = vperm.xlu0 %1103, %v173
        %v1105 = vpop.permute.xlu0 %1104
        %1107 = vset.pattern.permute.xlu0 2
        %1108 = vperm.xlu0 %1107, %v174
        %v1109 = vpop.permute.xlu0 %1108
        %1111 = vset.pattern.permute.xlu0 2
        %1112 = vperm.xlu0 %1111, %v175
        %v1113 = vpop.permute.xlu0 %1112
        %1115 = vset.pattern.permute.xlu0 2
        %1116 = vperm.xlu0 %1115, %v176
        %v1117 = vpop.permute.xlu0 %1116
        %1119 = vset.pattern.permute.xlu0 2
        %1120 = vperm.xlu0 %1119, %v177
        %v1121 = vpop.permute.xlu0 %1120
        %1123 = vset.pattern.permute.xlu0 2
        %1124 = vperm.xlu0 %1123, %v178
        %v1125 = vpop.permute.xlu0 %1124
        %1127 = vset.pattern.permute.xlu0 2
        %1128 = vperm.xlu0 %1127, %v179
        %v1129 = vpop.permute.xlu0 %1128
        %1131 = vset.pattern.permute.xlu0 2
        %1132 = vperm.xlu0 %1131, %v180
        %v1133 = vpop.permute.xlu0 %1132
        %1135 = vset.pattern.permute.xlu0 2
        %1136 = vperm.xlu0 %1135, %v181
        %v1137 = vpop.permute.xlu0 %1136
        %1139 = vset.pattern.permute.xlu0 2
        %1140 = vperm.xlu0 %1139, %v182
        %v1141 = vpop.permute.xlu0 %1140
        %1143 = vset.pattern.permute.xlu0 2
        %1144 = vperm.xlu0 %1143, %v183
        %v1145 = vpop.permute.xlu0 %1144
        %1147 = vset.pattern.permute.xlu0 2
        %1148 = vperm.xlu0 %1147, %v184
        %v1149 = vpop.permute.xlu0 %1148
        %1151 = vset.pattern.permute.xlu0 2
        %1152 = vperm.xlu0 %1151, %v185
        %v1153 = vpop.permute.xlu0 %1152
        %1155 = vset.pattern.permute.xlu0 2
        %1156 = vperm.xlu0 %1155, %v186
        %v1157 = vpop.permute.xlu0 %1156
        %1159 = vset.pattern.permute.xlu0 2
        %1160 = vperm.xlu0 %1159, %v187
        %v1161 = vpop.permute.xlu0 %1160
        %1163 = vset.pattern.permute.xlu0 2
        %1164 = vperm.xlu0 %1163, %v188
        %v1165 = vpop.permute.xlu0 %1164
        %1167 = vset.pattern.permute.xlu0 2
        %1168 = vperm.xlu0 %1167, %v189
        %v1169 = vpop.permute.xlu0 %1168
        %1171 = vset.pattern.permute.xlu0 2
        %1172 = vperm.xlu0 %1171, %v190
        %v1173 = vpop.permute.xlu0 %1172
        %1175 = vset.pattern.permute.xlu0 2
        %1176 = vperm.xlu0 %1175, %v191
        %v1177 = vpop.permute.xlu0 %1176
        %1179 = vset.pattern.permute.xlu0 2
        %1180 = vperm.xlu0 %1179, %v192
        %v1181 = vpop.permute.xlu0 %1180
        %1183 = vset.pattern.permute.xlu0 2
        %1184 = vperm.xlu0 %1183, %v193
        %v1185 = vpop.permute.xlu0 %1184
        %1187 = vset.pattern.permute.xlu0 2
        %1188 = vperm.xlu0 %1187, %v194
        %v1189 = vpop.permute.xlu0 %1188
        %1191 = vset.pattern.permute.xlu0 2
        %1192 = vperm.xlu0 %1191, %v195
        %v1193 = vpop.permute.xlu0 %1192
        %1195 = vset.pattern.permute.xlu0 2
        %1196 = vperm.xlu0 %1195, %v196
        %v1197 = vpop.permute.xlu0 %1196
        %1199 = vset.pattern.permute.xlu0 2
        %1200 = vperm.xlu0 %1199, %v197
        %v1201 = vpop.permute.xlu0 %1200
        %1203 = vset.pattern.permute.xlu0 2
        %1204 = vperm.xlu0 %1203, %v198
        %v1205 = vpop.permute.xlu0 %1204
        %1207 = vset.pattern.permute.xlu0 2
        %1208 = vperm.xlu0 %1207, %v199
        %v1209 = vpop.permute.xlu0 %1208
        %1211 = vset.pattern.permute.xlu0 2
        %1212 = vperm.xlu0 %1211, %v200
        %v1213 = vpop.permute.xlu0 %1212
        %1215 = vset.pattern.permute.xlu0 2
        %1216 = vperm.xlu0 %1215, %v201
        %v1217 = vpop.permute.xlu0 %1216
        %1219 = vset.pattern.permute.xlu0 2
        %1220 = vperm.xlu0 %1219, %v202
        %v1221 = vpop.permute.xlu0 %1220
        %1223 = vset.pattern.permute.xlu0 2
        %1224 = vperm.xlu0 %1223, %v203
        %v1225 = vpop.permute.xlu0 %1224
        %1227 = vset.pattern.permute.xlu0 2
        %1228 = vperm.xlu0 %1227, %v204
        %v1229 = vpop.permute.xlu0 %1228
        %1231 = vset.pattern.permute.xlu0 2
        %1232 = vperm.xlu0 %1231, %v205
        %v1233 = vpop.permute.xlu0 %1232
        %1235 = vset.pattern.permute.xlu0 2
        %1236 = vperm.xlu0 %1235, %v206
        %v1237 = vpop.permute.xlu0 %1236
        %1239 = vset.pattern.permute.xlu0 2
        %1240 = vperm.xlu0 %1239, %v207
        %v1241 = vpop.permute.xlu0 %1240
        %1243 = vset.pattern.permute.xlu0 2
        %1244 = vperm.xlu0 %1243, %v208
        %v1245 = vpop.permute.xlu0 %1244
        %1247 = vset.pattern.permute.xlu0 2
        %1248 = vperm.xlu0 %1247, %v209
        %v1249 = vpop.permute.xlu0 %1248
        %1251 = vset.pattern.permute.xlu0 2
        %1252 = vperm.xlu0 %1251, %v210
        %v1253 = vpop.permute.xlu0 %1252
        %1255 = vset.pattern.permute.xlu0 2
        %1256 = vperm.xlu0 %1255, %v211
        %v1257 = vpop.permute.xlu0 %1256
        %1259 = vset.pattern.permute.xlu0 2
        %1260 = vperm.xlu0 %1259, %v212
        %v1261 = vpop.permute.xlu0 %1260
        %1263 = vset.pattern.permute.xlu0 2
        %1264 = vperm.xlu0 %1263, %v213
        %v1265 = vpop.permute.xlu0 %1264
        %1267 = vset.pattern.permute.xlu0 2
        %1268 = vperm.xlu0 %1267, %v214
        %v1269 = vpop.permute.xlu0 %1268
        %1271 = vset.pattern.permute.xlu0 2
        %1272 = vperm.xlu0 %1271, %v215
        %v1273 = vpop.permute.xlu0 %1272
        %1275 = vset.pattern.permute.xlu0 2
        %1276 = vperm.xlu0 %1275, %v216
        %v1277 = vpop.permute.xlu0 %1276
        %1279 = vset.pattern.permute.xlu0 2
        %1280 = vperm.xlu0 %1279, %v217
        %v1281 = vpop.permute.xlu0 %1280
        %1283 = vset.pattern.permute.xlu0 2
        %1284 = vperm.xlu0 %1283, %v218
        %v1285 = vpop.permute.xlu0 %1284
        %1287 = vset.pattern.permute.xlu0 2
        %1288 = vperm.xlu0 %1287, %v219
        %v1289 = vpop.permute.xlu0 %1288
        %1291 = vset.pattern.permute.xlu0 2
        %1292 = vperm.xlu0 %1291, %v220
        %v1293 = vpop.permute.xlu0 %1292
        %1295 = vset.pattern.permute.xlu0 2
        %1296 = vperm.xlu0 %1295, %v221
        %v1297 = vpop.permute.xlu0 %1296
        %1299 = vset.pattern.permute.xlu0 2
        %1300 = vperm.xlu0 %1299, %v222
        %v1301 = vpop.permute.xlu0 %1300
        %1303 = vset.pattern.permute.xlu0 2
        %1304 = vperm.xlu0 %1303, %v223
        %v1305 = vpop.permute.xlu0 %1304
        %1307 = vset.pattern.permute.xlu0 2
        %1308 = vperm.xlu0 %1307, %v224
        %v1309 = vpop.permute.xlu0 %1308
        %1311 = vset.pattern.permute.xlu0 2
        %1312 = vperm.xlu0 %1311, %v225
        %v1313 = vpop.permute.xlu0 %1312
        %1315 = vset.pattern.permute.xlu0 2
        %1316 = vperm.xlu0 %1315, %v226
        %v1317 = vpop.permute.xlu0 %1316
        %1319 = vset.pattern.permute.xlu0 2
        %1320 = vperm.xlu0 %1319, %v227
        %v1321 = vpop.permute.xlu0 %1320
        %1323 = vset.pattern.permute.xlu0 2
        %1324 = vperm.xlu0 %1323, %v228
        %v1325 = vpop.permute.xlu0 %1324
        %1327 = vset.pattern.permute.xlu0 2
        %1328 = vperm.xlu0 %1327, %v229
        %v1329 = vpop.permute.xlu0 %1328
        %1331 = vset.pattern.permute.xlu0 2
        %1332 = vperm.xlu0 %1331, %v230
        %v1333 = vpop.permute.xlu0 %1332
        %1335 = vset.pattern.permute.xlu0 2
        %1336 = vperm.xlu0 %1335, %v231
        %v1337 = vpop.permute.xlu0 %1336
        %1339 = vset.pattern.permute.xlu0 2
        %1340 = vperm.xlu0 %1339, %v232
        %v1341 = vpop.permute.xlu0 %1340
        %1343 = vset.pattern.permute.xlu0 2
        %1344 = vperm.xlu0 %1343, %v233
        %v1345 = vpop.permute.xlu0 %1344
        %v1347 = vperm.slane %v1086, 0
        %v1348 = vmul.f32 %v1089, %v1347
        %v1349 = vmul.f32 %v1093, %v1347
        %v1350 = vmul.f32 %v1097, %v1347
        %v1351 = vmul.f32 %v1101, %v1347
        %v1352 = vmul.f32 %v1105, %v1347
        %v1353 = vmul.f32 %v1109, %v1347
        %v1354 = vmul.f32 %v1113, %v1347
        %v1355 = vmul.f32 %v1117, %v1347
        %v1356 = vmul.f32 %v1121, %v1347
        %v1357 = vmul.f32 %v1125, %v1347
        %v1358 = vmul.f32 %v1129, %v1347
        %v1359 = vmul.f32 %v1133, %v1347
        %v1360 = vmul.f32 %v1137, %v1347
        %v1361 = vmul.f32 %v1141, %v1347
        %v1362 = vmul.f32 %v1145, %v1347
        %v1363 = vmul.f32 %v1149, %v1347
        %v1364 = vmul.f32 %v1153, %v1347
        %v1365 = vmul.f32 %v1157, %v1347
        %v1366 = vmul.f32 %v1161, %v1347
        %v1367 = vmul.f32 %v1165, %v1347
        %v1368 = vmul.f32 %v1169, %v1347
        %v1369 = vmul.f32 %v1173, %v1347
        %v1370 = vmul.f32 %v1177, %v1347
        %v1371 = vmul.f32 %v1181, %v1347
        %v1372 = vmul.f32 %v1185, %v1347
        %v1373 = vmul.f32 %v1189, %v1347
        %v1374 = vmul.f32 %v1193, %v1347
        %v1375 = vmul.f32 %v1197, %v1347
        %v1376 = vmul.f32 %v1201, %v1347
        %v1377 = vmul.f32 %v1205, %v1347
        %v1378 = vmul.f32 %v1209, %v1347
        %v1379 = vmul.f32 %v1213, %v1347
        %v1380 = vmul.f32 %v1217, %v1347
        %v1381 = vmul.f32 %v1221, %v1347
        %v1382 = vmul.f32 %v1225, %v1347
        %v1383 = vmul.f32 %v1229, %v1347
        %v1384 = vmul.f32 %v1233, %v1347
        %v1385 = vmul.f32 %v1237, %v1347
        %v1386 = vmul.f32 %v1241, %v1347
        %v1387 = vmul.f32 %v1245, %v1347
        %v1388 = vmul.f32 %v1249, %v1347
        %v1389 = vmul.f32 %v1253, %v1347
        %v1390 = vmul.f32 %v1257, %v1347
        %v1391 = vmul.f32 %v1261, %v1347
        %v1392 = vmul.f32 %v1265, %v1347
        %v1393 = vmul.f32 %v1269, %v1347
        %v1394 = vmul.f32 %v1273, %v1347
        %v1395 = vmul.f32 %v1277, %v1347
        %v1396 = vmul.f32 %v1281, %v1347
        %v1397 = vmul.f32 %v1285, %v1347
        %v1398 = vmul.f32 %v1289, %v1347
        %v1399 = vmul.f32 %v1293, %v1347
        %v1400 = vmul.f32 %v1297, %v1347
        %v1401 = vmul.f32 %v1301, %v1347
        %v1402 = vmul.f32 %v1305, %v1347
        %v1403 = vmul.f32 %v1309, %v1347
        %v1404 = vmul.f32 %v1313, %v1347
        %v1405 = vmul.f32 %v1317, %v1347
        %v1406 = vmul.f32 %v1321, %v1347
        %v1407 = vmul.f32 %v1325, %v1347
        %v1408 = vmul.f32 %v1329, %v1347
        %v1409 = vmul.f32 %v1333, %v1347
        %v1410 = vmul.f32 %v1337, %v1347
        %v1411 = vmul.f32 %v1341, %v1347
        %v1412 = vmul.f32 %v1345, %v1347
        %v1413 = vadd.f32 %v1021, %v1348
        %v1414 = vadd.f32 %v1022, %v1349
        %v1415 = vadd.f32 %v1023, %v1350
        %v1416 = vadd.f32 %v1024, %v1351
        %v1417 = vadd.f32 %v1025, %v1352
        %v1418 = vadd.f32 %v1026, %v1353
        %v1419 = vadd.f32 %v1027, %v1354
        %v1420 = vadd.f32 %v1028, %v1355
        %v1421 = vadd.f32 %v1029, %v1356
        %v1422 = vadd.f32 %v1030, %v1357
        %v1423 = vadd.f32 %v1031, %v1358
        %v1424 = vadd.f32 %v1032, %v1359
        %v1425 = vadd.f32 %v1033, %v1360
        %v1426 = vadd.f32 %v1034, %v1361
        %v1427 = vadd.f32 %v1035, %v1362
        %v1428 = vadd.f32 %v1036, %v1363
        %v1429 = vadd.f32 %v1037, %v1364
        %v1430 = vadd.f32 %v1038, %v1365
        %v1431 = vadd.f32 %v1039, %v1366
        %v1432 = vadd.f32 %v1040, %v1367
        %v1433 = vadd.f32 %v1041, %v1368
        %v1434 = vadd.f32 %v1042, %v1369
        %v1435 = vadd.f32 %v1043, %v1370
        %v1436 = vadd.f32 %v1044, %v1371
        %v1437 = vadd.f32 %v1045, %v1372
        %v1438 = vadd.f32 %v1046, %v1373
        %v1439 = vadd.f32 %v1047, %v1374
        %v1440 = vadd.f32 %v1048, %v1375
        %v1441 = vadd.f32 %v1049, %v1376
        %v1442 = vadd.f32 %v1050, %v1377
        %v1443 = vadd.f32 %v1051, %v1378
        %v1444 = vadd.f32 %v1052, %v1379
        %v1445 = vadd.f32 %v1053, %v1380
        %v1446 = vadd.f32 %v1054, %v1381
        %v1447 = vadd.f32 %v1055, %v1382
        %v1448 = vadd.f32 %v1056, %v1383
        %v1449 = vadd.f32 %v1057, %v1384
        %v1450 = vadd.f32 %v1058, %v1385
        %v1451 = vadd.f32 %v1059, %v1386
        %v1452 = vadd.f32 %v1060, %v1387
        %v1453 = vadd.f32 %v1061, %v1388
        %v1454 = vadd.f32 %v1062, %v1389
        %v1455 = vadd.f32 %v1063, %v1390
        %v1456 = vadd.f32 %v1064, %v1391
        %v1457 = vadd.f32 %v1065, %v1392
        %v1458 = vadd.f32 %v1066, %v1393
        %v1459 = vadd.f32 %v1067, %v1394
        %v1460 = vadd.f32 %v1068, %v1395
        %v1461 = vadd.f32 %v1069, %v1396
        %v1462 = vadd.f32 %v1070, %v1397
        %v1463 = vadd.f32 %v1071, %v1398
        %v1464 = vadd.f32 %v1072, %v1399
        %v1465 = vadd.f32 %v1073, %v1400
        %v1466 = vadd.f32 %v1074, %v1401
        %v1467 = vadd.f32 %v1075, %v1402
        %v1468 = vadd.f32 %v1076, %v1403
        %v1469 = vadd.f32 %v1077, %v1404
        %v1470 = vadd.f32 %v1078, %v1405
        %v1471 = vadd.f32 %v1079, %v1406
        %v1472 = vadd.f32 %v1080, %v1407
        %v1473 = vadd.f32 %v1081, %v1408
        %v1474 = vadd.f32 %v1082, %v1409
        %v1475 = vadd.f32 %v1083, %v1410
        %v1476 = vadd.f32 %v1084, %v1411
        %v1477 = vadd.f32 %v1085, %v1412
        %v1478 = vld [vmem:[%s1 + $0x3] sm:$0x1]
        %1479 = vset.pattern.permute.xlu0 3
        %1480 = vperm.xlu0 %1479, %v169
        %v1481 = vpop.permute.xlu0 %1480
        %1483 = vset.pattern.permute.xlu0 3
        %1484 = vperm.xlu0 %1483, %v170
        %v1485 = vpop.permute.xlu0 %1484
        %1487 = vset.pattern.permute.xlu0 3
        %1488 = vperm.xlu0 %1487, %v171
        %v1489 = vpop.permute.xlu0 %1488
        %1491 = vset.pattern.permute.xlu0 3
        %1492 = vperm.xlu0 %1491, %v172
        %v1493 = vpop.permute.xlu0 %1492
        %1495 = vset.pattern.permute.xlu0 3
        %1496 = vperm.xlu0 %1495, %v173
        %v1497 = vpop.permute.xlu0 %1496
        %1499 = vset.pattern.permute.xlu0 3
        %1500 = vperm.xlu0 %1499, %v174
        %v1501 = vpop.permute.xlu0 %1500
        %1503 = vset.pattern.permute.xlu0 3
        %1504 = vperm.xlu0 %1503, %v175
        %v1505 = vpop.permute.xlu0 %1504
        %1507 = vset.pattern.permute.xlu0 3
        %1508 = vperm.xlu0 %1507, %v176
        %v1509 = vpop.permute.xlu0 %1508
        %1511 = vset.pattern.permute.xlu0 3
        %1512 = vperm.xlu0 %1511, %v177
        %v1513 = vpop.permute.xlu0 %1512
        %1515 = vset.pattern.permute.xlu0 3
        %1516 = vperm.xlu0 %1515, %v178
        %v1517 = vpop.permute.xlu0 %1516
        %1519 = vset.pattern.permute.xlu0 3
        %1520 = vperm.xlu0 %1519, %v179
        %v1521 = vpop.permute.xlu0 %1520
        %1523 = vset.pattern.permute.xlu0 3
        %1524 = vperm.xlu0 %1523, %v180
        %v1525 = vpop.permute.xlu0 %1524
        %1527 = vset.pattern.permute.xlu0 3
        %1528 = vperm.xlu0 %1527, %v181
        %v1529 = vpop.permute.xlu0 %1528
        %1531 = vset.pattern.permute.xlu0 3
        %1532 = vperm.xlu0 %1531, %v182
        %v1533 = vpop.permute.xlu0 %1532
        %1535 = vset.pattern.permute.xlu0 3
        %1536 = vperm.xlu0 %1535, %v183
        %v1537 = vpop.permute.xlu0 %1536
        %1539 = vset.pattern.permute.xlu0 3
        %1540 = vperm.xlu0 %1539, %v184
        %v1541 = vpop.permute.xlu0 %1540
        %1543 = vset.pattern.permute.xlu0 3
        %1544 = vperm.xlu0 %1543, %v185
        %v1545 = vpop.permute.xlu0 %1544
        %1547 = vset.pattern.permute.xlu0 3
        %1548 = vperm.xlu0 %1547, %v186
        %v1549 = vpop.permute.xlu0 %1548
        %1551 = vset.pattern.permute.xlu0 3
        %1552 = vperm.xlu0 %1551, %v187
        %v1553 = vpop.permute.xlu0 %1552
        %1555 = vset.pattern.permute.xlu0 3
        %1556 = vperm.xlu0 %1555, %v188
        %v1557 = vpop.permute.xlu0 %1556
        %1559 = vset.pattern.permute.xlu0 3
        %1560 = vperm.xlu0 %1559, %v189
        %v1561 = vpop.permute.xlu0 %1560
        %1563 = vset.pattern.permute.xlu0 3
        %1564 = vperm.xlu0 %1563, %v190
        %v1565 = vpop.permute.xlu0 %1564
        %1567 = vset.pattern.permute.xlu0 3
        %1568 = vperm.xlu0 %1567, %v191
        %v1569 = vpop.permute.xlu0 %1568
        %1571 = vset.pattern.permute.xlu0 3
        %1572 = vperm.xlu0 %1571, %v192
        %v1573 = vpop.permute.xlu0 %1572
        %1575 = vset.pattern.permute.xlu0 3
        %1576 = vperm.xlu0 %1575, %v193
        %v1577 = vpop.permute.xlu0 %1576
        %1579 = vset.pattern.permute.xlu0 3
        %1580 = vperm.xlu0 %1579, %v194
        %v1581 = vpop.permute.xlu0 %1580
        %1583 = vset.pattern.permute.xlu0 3
        %1584 = vperm.xlu0 %1583, %v195
        %v1585 = vpop.permute.xlu0 %1584
        %1587 = vset.pattern.permute.xlu0 3
        %1588 = vperm.xlu0 %1587, %v196
        %v1589 = vpop.permute.xlu0 %1588
        %1591 = vset.pattern.permute.xlu0 3
        %1592 = vperm.xlu0 %1591, %v197
        %v1593 = vpop.permute.xlu0 %1592
        %1595 = vset.pattern.permute.xlu0 3
        %1596 = vperm.xlu0 %1595, %v198
        %v1597 = vpop.permute.xlu0 %1596
        %1599 = vset.pattern.permute.xlu0 3
        %1600 = vperm.xlu0 %1599, %v199
        %v1601 = vpop.permute.xlu0 %1600
        %1603 = vset.pattern.permute.xlu0 3
        %1604 = vperm.xlu0 %1603, %v200
        %v1605 = vpop.permute.xlu0 %1604
        %1607 = vset.pattern.permute.xlu0 3
        %1608 = vperm.xlu0 %1607, %v201
        %v1609 = vpop.permute.xlu0 %1608
        %1611 = vset.pattern.permute.xlu0 3
        %1612 = vperm.xlu0 %1611, %v202
        %v1613 = vpop.permute.xlu0 %1612
        %1615 = vset.pattern.permute.xlu0 3
        %1616 = vperm.xlu0 %1615, %v203
        %v1617 = vpop.permute.xlu0 %1616
        %1619 = vset.pattern.permute.xlu0 3
        %1620 = vperm.xlu0 %1619, %v204
        %v1621 = vpop.permute.xlu0 %1620
        %1623 = vset.pattern.permute.xlu0 3
        %1624 = vperm.xlu0 %1623, %v205
        %v1625 = vpop.permute.xlu0 %1624
        %1627 = vset.pattern.permute.xlu0 3
        %1628 = vperm.xlu0 %1627, %v206
        %v1629 = vpop.permute.xlu0 %1628
        %1631 = vset.pattern.permute.xlu0 3
        %1632 = vperm.xlu0 %1631, %v207
        %v1633 = vpop.permute.xlu0 %1632
        %1635 = vset.pattern.permute.xlu0 3
        %1636 = vperm.xlu0 %1635, %v208
        %v1637 = vpop.permute.xlu0 %1636
        %1639 = vset.pattern.permute.xlu0 3
        %1640 = vperm.xlu0 %1639, %v209
        %v1641 = vpop.permute.xlu0 %1640
        %1643 = vset.pattern.permute.xlu0 3
        %1644 = vperm.xlu0 %1643, %v210
        %v1645 = vpop.permute.xlu0 %1644
        %1647 = vset.pattern.permute.xlu0 3
        %1648 = vperm.xlu0 %1647, %v211
        %v1649 = vpop.permute.xlu0 %1648
        %1651 = vset.pattern.permute.xlu0 3
        %1652 = vperm.xlu0 %1651, %v212
        %v1653 = vpop.permute.xlu0 %1652
        %1655 = vset.pattern.permute.xlu0 3
        %1656 = vperm.xlu0 %1655, %v213
        %v1657 = vpop.permute.xlu0 %1656
        %1659 = vset.pattern.permute.xlu0 3
        %1660 = vperm.xlu0 %1659, %v214
        %v1661 = vpop.permute.xlu0 %1660
        %1663 = vset.pattern.permute.xlu0 3
        %1664 = vperm.xlu0 %1663, %v215
        %v1665 = vpop.permute.xlu0 %1664
        %1667 = vset.pattern.permute.xlu0 3
        %1668 = vperm.xlu0 %1667, %v216
        %v1669 = vpop.permute.xlu0 %1668
        %1671 = vset.pattern.permute.xlu0 3
        %1672 = vperm.xlu0 %1671, %v217
        %v1673 = vpop.permute.xlu0 %1672
        %1675 = vset.pattern.permute.xlu0 3
        %1676 = vperm.xlu0 %1675, %v218
        %v1677 = vpop.permute.xlu0 %1676
        %1679 = vset.pattern.permute.xlu0 3
        %1680 = vperm.xlu0 %1679, %v219
        %v1681 = vpop.permute.xlu0 %1680
        %1683 = vset.pattern.permute.xlu0 3
        %1684 = vperm.xlu0 %1683, %v220
        %v1685 = vpop.permute.xlu0 %1684
        %1687 = vset.pattern.permute.xlu0 3
        %1688 = vperm.xlu0 %1687, %v221
        %v1689 = vpop.permute.xlu0 %1688
        %1691 = vset.pattern.permute.xlu0 3
        %1692 = vperm.xlu0 %1691, %v222
        %v1693 = vpop.permute.xlu0 %1692
        %1695 = vset.pattern.permute.xlu0 3
        %1696 = vperm.xlu0 %1695, %v223
        %v1697 = vpop.permute.xlu0 %1696
        %1699 = vset.pattern.permute.xlu0 3
        %1700 = vperm.xlu0 %1699, %v224
        %v1701 = vpop.permute.xlu0 %1700
        %1703 = vset.pattern.permute.xlu0 3
        %1704 = vperm.xlu0 %1703, %v225
        %v1705 = vpop.permute.xlu0 %1704
        %1707 = vset.pattern.permute.xlu0 3
        %1708 = vperm.xlu0 %1707, %v226
        %v1709 = vpop.permute.xlu0 %1708
        %1711 = vset.pattern.permute.xlu0 3
        %1712 = vperm.xlu0 %1711, %v227
        %v1713 = vpop.permute.xlu0 %1712
        %1715 = vset.pattern.permute.xlu0 3
        %1716 = vperm.xlu0 %1715, %v228
        %v1717 = vpop.permute.xlu0 %1716
        %1719 = vset.pattern.permute.xlu0 3
        %1720 = vperm.xlu0 %1719, %v229
        %v1721 = vpop.permute.xlu0 %1720
        %1723 = vset.pattern.permute.xlu0 3
        %1724 = vperm.xlu0 %1723, %v230
        %v1725 = vpop.permute.xlu0 %1724
        %1727 = vset.pattern.permute.xlu0 3
        %1728 = vperm.xlu0 %1727, %v231
        %v1729 = vpop.permute.xlu0 %1728
        %1731 = vset.pattern.permute.xlu0 3
        %1732 = vperm.xlu0 %1731, %v232
        %v1733 = vpop.permute.xlu0 %1732
        %1735 = vset.pattern.permute.xlu0 3
        %1736 = vperm.xlu0 %1735, %v233
        %v1737 = vpop.permute.xlu0 %1736
        %v1739 = vperm.slane %v1478, 0
        %v1740 = vmul.f32 %v1481, %v1739
        %v1741 = vmul.f32 %v1485, %v1739
        %v1742 = vmul.f32 %v1489, %v1739
        %v1743 = vmul.f32 %v1493, %v1739
        %v1744 = vmul.f32 %v1497, %v1739
        %v1745 = vmul.f32 %v1501, %v1739
        %v1746 = vmul.f32 %v1505, %v1739
        %v1747 = vmul.f32 %v1509, %v1739
        %v1748 = vmul.f32 %v1513, %v1739
        %v1749 = vmul.f32 %v1517, %v1739
        %v1750 = vmul.f32 %v1521, %v1739
        %v1751 = vmul.f32 %v1525, %v1739
        %v1752 = vmul.f32 %v1529, %v1739
        %v1753 = vmul.f32 %v1533, %v1739
        %v1754 = vmul.f32 %v1537, %v1739
        %v1755 = vmul.f32 %v1541, %v1739
        %v1756 = vmul.f32 %v1545, %v1739
        %v1757 = vmul.f32 %v1549, %v1739
        %v1758 = vmul.f32 %v1553, %v1739
        %v1759 = vmul.f32 %v1557, %v1739
        %v1760 = vmul.f32 %v1561, %v1739
        %v1761 = vmul.f32 %v1565, %v1739
        %v1762 = vmul.f32 %v1569, %v1739
        %v1763 = vmul.f32 %v1573, %v1739
        %v1764 = vmul.f32 %v1577, %v1739
        %v1765 = vmul.f32 %v1581, %v1739
        %v1766 = vmul.f32 %v1585, %v1739
        %v1767 = vmul.f32 %v1589, %v1739
        %v1768 = vmul.f32 %v1593, %v1739
        %v1769 = vmul.f32 %v1597, %v1739
        %v1770 = vmul.f32 %v1601, %v1739
        %v1771 = vmul.f32 %v1605, %v1739
        %v1772 = vmul.f32 %v1609, %v1739
        %v1773 = vmul.f32 %v1613, %v1739
        %v1774 = vmul.f32 %v1617, %v1739
        %v1775 = vmul.f32 %v1621, %v1739
        %v1776 = vmul.f32 %v1625, %v1739
        %v1777 = vmul.f32 %v1629, %v1739
        %v1778 = vmul.f32 %v1633, %v1739
        %v1779 = vmul.f32 %v1637, %v1739
        %v1780 = vmul.f32 %v1641, %v1739
        %v1781 = vmul.f32 %v1645, %v1739
        %v1782 = vmul.f32 %v1649, %v1739
        %v1783 = vmul.f32 %v1653, %v1739
        %v1784 = vmul.f32 %v1657, %v1739
        %v1785 = vmul.f32 %v1661, %v1739
        %v1786 = vmul.f32 %v1665, %v1739
        %v1787 = vmul.f32 %v1669, %v1739
        %v1788 = vmul.f32 %v1673, %v1739
        %v1789 = vmul.f32 %v1677, %v1739
        %v1790 = vmul.f32 %v1681, %v1739
        %v1791 = vmul.f32 %v1685, %v1739
        %v1792 = vmul.f32 %v1689, %v1739
        %v1793 = vmul.f32 %v1693, %v1739
        %v1794 = vmul.f32 %v1697, %v1739
        %v1795 = vmul.f32 %v1701, %v1739
        %v1796 = vmul.f32 %v1705, %v1739
        %v1797 = vmul.f32 %v1709, %v1739
        %v1798 = vmul.f32 %v1713, %v1739
        %v1799 = vmul.f32 %v1717, %v1739
        %v1800 = vmul.f32 %v1721, %v1739
        %v1801 = vmul.f32 %v1725, %v1739
        %v1802 = vmul.f32 %v1729, %v1739
        %v1803 = vmul.f32 %v1733, %v1739
        %v1804 = vmul.f32 %v1737, %v1739
        %v1805 = vadd.f32 %v1413, %v1740
        %v1806 = vadd.f32 %v1414, %v1741
        %v1807 = vadd.f32 %v1415, %v1742
        %v1808 = vadd.f32 %v1416, %v1743
        %v1809 = vadd.f32 %v1417, %v1744
        %v1810 = vadd.f32 %v1418, %v1745
        %v1811 = vadd.f32 %v1419, %v1746
        %v1812 = vadd.f32 %v1420, %v1747
        %v1813 = vadd.f32 %v1421, %v1748
        %v1814 = vadd.f32 %v1422, %v1749
        %v1815 = vadd.f32 %v1423, %v1750
        %v1816 = vadd.f32 %v1424, %v1751
        %v1817 = vadd.f32 %v1425, %v1752
        %v1818 = vadd.f32 %v1426, %v1753
        %v1819 = vadd.f32 %v1427, %v1754
        %v1820 = vadd.f32 %v1428, %v1755
        %v1821 = vadd.f32 %v1429, %v1756
        %v1822 = vadd.f32 %v1430, %v1757
        %v1823 = vadd.f32 %v1431, %v1758
        %v1824 = vadd.f32 %v1432, %v1759
        %v1825 = vadd.f32 %v1433, %v1760
        %v1826 = vadd.f32 %v1434, %v1761
        %v1827 = vadd.f32 %v1435, %v1762
        %v1828 = vadd.f32 %v1436, %v1763
        %v1829 = vadd.f32 %v1437, %v1764
        %v1830 = vadd.f32 %v1438, %v1765
        %v1831 = vadd.f32 %v1439, %v1766
        %v1832 = vadd.f32 %v1440, %v1767
        %v1833 = vadd.f32 %v1441, %v1768
        %v1834 = vadd.f32 %v1442, %v1769
        %v1835 = vadd.f32 %v1443, %v1770
        %v1836 = vadd.f32 %v1444, %v1771
        %v1837 = vadd.f32 %v1445, %v1772
        %v1838 = vadd.f32 %v1446, %v1773
        %v1839 = vadd.f32 %v1447, %v1774
        %v1840 = vadd.f32 %v1448, %v1775
        %v1841 = vadd.f32 %v1449, %v1776
        %v1842 = vadd.f32 %v1450, %v1777
        %v1843 = vadd.f32 %v1451, %v1778
        %v1844 = vadd.f32 %v1452, %v1779
        %v1845 = vadd.f32 %v1453, %v1780
        %v1846 = vadd.f32 %v1454, %v1781
        %v1847 = vadd.f32 %v1455, %v1782
        %v1848 = vadd.f32 %v1456, %v1783
        %v1849 = vadd.f32 %v1457, %v1784
        %v1850 = vadd.f32 %v1458, %v1785
        %v1851 = vadd.f32 %v1459, %v1786
        %v1852 = vadd.f32 %v1460, %v1787
        %v1853 = vadd.f32 %v1461, %v1788
        %v1854 = vadd.f32 %v1462, %v1789
        %v1855 = vadd.f32 %v1463, %v1790
        %v1856 = vadd.f32 %v1464, %v1791
        %v1857 = vadd.f32 %v1465, %v1792
        %v1858 = vadd.f32 %v1466, %v1793
        %v1859 = vadd.f32 %v1467, %v1794
        %v1860 = vadd.f32 %v1468, %v1795
        %v1861 = vadd.f32 %v1469, %v1796
        %v1862 = vadd.f32 %v1470, %v1797
        %v1863 = vadd.f32 %v1471, %v1798
        %v1864 = vadd.f32 %v1472, %v1799
        %v1865 = vadd.f32 %v1473, %v1800
        %v1866 = vadd.f32 %v1474, %v1801
        %v1867 = vadd.f32 %v1475, %v1802
        %v1868 = vadd.f32 %v1476, %v1803
        %v1869 = vadd.f32 %v1477, %v1804
        %v1870 = vmul.f32 %v1805, %v1805
        %v1871 = vmul.f32 %v1806, %v1806
        %v1872 = vmul.f32 %v1807, %v1807
        %v1873 = vmul.f32 %v1808, %v1808
        %v1874 = vmul.f32 %v1809, %v1809
        %v1875 = vmul.f32 %v1810, %v1810
        %v1876 = vmul.f32 %v1811, %v1811
        %v1877 = vmul.f32 %v1812, %v1812
        %v1878 = vmul.f32 %v1813, %v1813
        %v1879 = vmul.f32 %v1814, %v1814
        %v1880 = vmul.f32 %v1815, %v1815
        %v1881 = vmul.f32 %v1816, %v1816
        %v1882 = vmul.f32 %v1817, %v1817
        %v1883 = vmul.f32 %v1818, %v1818
        %v1884 = vmul.f32 %v1819, %v1819
        %v1885 = vmul.f32 %v1820, %v1820
        %v1886 = vmul.f32 %v1821, %v1821
        %v1887 = vmul.f32 %v1822, %v1822
        %v1888 = vmul.f32 %v1823, %v1823
        %v1889 = vmul.f32 %v1824, %v1824
        %v1890 = vmul.f32 %v1825, %v1825
        %v1891 = vmul.f32 %v1826, %v1826
        %v1892 = vmul.f32 %v1827, %v1827
        %v1893 = vmul.f32 %v1828, %v1828
        %v1894 = vmul.f32 %v1829, %v1829
        %v1895 = vmul.f32 %v1830, %v1830
        %v1896 = vmul.f32 %v1831, %v1831
        %v1897 = vmul.f32 %v1832, %v1832
        %v1898 = vmul.f32 %v1833, %v1833
        %v1899 = vmul.f32 %v1834, %v1834
        %v1900 = vmul.f32 %v1835, %v1835
        %v1901 = vmul.f32 %v1836, %v1836
        %v1902 = vmul.f32 %v1837, %v1837
        %v1903 = vmul.f32 %v1838, %v1838
        %v1904 = vmul.f32 %v1839, %v1839
        %v1905 = vmul.f32 %v1840, %v1840
        %v1906 = vmul.f32 %v1841, %v1841
        %v1907 = vmul.f32 %v1842, %v1842
        %v1908 = vmul.f32 %v1843, %v1843
        %v1909 = vmul.f32 %v1844, %v1844
        %v1910 = vmul.f32 %v1845, %v1845
        %v1911 = vmul.f32 %v1846, %v1846
        %v1912 = vmul.f32 %v1847, %v1847
        %v1913 = vmul.f32 %v1848, %v1848
        %v1914 = vmul.f32 %v1849, %v1849
        %v1915 = vmul.f32 %v1850, %v1850
        %v1916 = vmul.f32 %v1851, %v1851
        %v1917 = vmul.f32 %v1852, %v1852
        %v1918 = vmul.f32 %v1853, %v1853
        %v1919 = vmul.f32 %v1854, %v1854
        %v1920 = vmul.f32 %v1855, %v1855
        %v1921 = vmul.f32 %v1856, %v1856
        %v1922 = vmul.f32 %v1857, %v1857
        %v1923 = vmul.f32 %v1858, %v1858
        %v1924 = vmul.f32 %v1859, %v1859
        %v1925 = vmul.f32 %v1860, %v1860
        %v1926 = vmul.f32 %v1861, %v1861
        %v1927 = vmul.f32 %v1862, %v1862
        %v1928 = vmul.f32 %v1863, %v1863
        %v1929 = vmul.f32 %v1864, %v1864
        %v1930 = vmul.f32 %v1865, %v1865
        %v1931 = vmul.f32 %v1866, %v1866
        %v1932 = vmul.f32 %v1867, %v1867
        %v1933 = vmul.f32 %v1868, %v1868
        %v1934 = vmul.f32 %v1869, %v1869
        %v1935 = vperm.slane %v235, 0
        %v1936 = vmul.f32 %v1935, %v1870
        %v1937 = vmul.f32 %v1935, %v1871
        %v1938 = vmul.f32 %v1935, %v1872
        %v1939 = vmul.f32 %v1935, %v1873
        %v1940 = vmul.f32 %v1935, %v1874
        %v1941 = vmul.f32 %v1935, %v1875
        %v1942 = vmul.f32 %v1935, %v1876
        %v1943 = vmul.f32 %v1935, %v1877
        %v1944 = vmul.f32 %v1935, %v1878
        %v1945 = vmul.f32 %v1935, %v1879
        %v1946 = vmul.f32 %v1935, %v1880
        %v1947 = vmul.f32 %v1935, %v1881
        %v1948 = vmul.f32 %v1935, %v1882
        %v1949 = vmul.f32 %v1935, %v1883
        %v1950 = vmul.f32 %v1935, %v1884
        %v1951 = vmul.f32 %v1935, %v1885
        %v1952 = vmul.f32 %v1935, %v1886
        %v1953 = vmul.f32 %v1935, %v1887
        %v1954 = vmul.f32 %v1935, %v1888
        %v1955 = vmul.f32 %v1935, %v1889
        %v1956 = vmul.f32 %v1935, %v1890
        %v1957 = vmul.f32 %v1935, %v1891
        %v1958 = vmul.f32 %v1935, %v1892
        %v1959 = vmul.f32 %v1935, %v1893
        %v1960 = vmul.f32 %v1935, %v1894
        %v1961 = vmul.f32 %v1935, %v1895
        %v1962 = vmul.f32 %v1935, %v1896
        %v1963 = vmul.f32 %v1935, %v1897
        %v1964 = vmul.f32 %v1935, %v1898
        %v1965 = vmul.f32 %v1935, %v1899
        %v1966 = vmul.f32 %v1935, %v1900
        %v1967 = vmul.f32 %v1935, %v1901
        %v1968 = vmul.f32 %v1935, %v1902
        %v1969 = vmul.f32 %v1935, %v1903
        %v1970 = vmul.f32 %v1935, %v1904
        %v1971 = vmul.f32 %v1935, %v1905
        %v1972 = vmul.f32 %v1935, %v1906
        %v1973 = vmul.f32 %v1935, %v1907
        %v1974 = vmul.f32 %v1935, %v1908
        %v1975 = vmul.f32 %v1935, %v1909
        %v1976 = vmul.f32 %v1935, %v1910
        %v1977 = vmul.f32 %v1935, %v1911
        %v1978 = vmul.f32 %v1935, %v1912
        %v1979 = vmul.f32 %v1935, %v1913
        %v1980 = vmul.f32 %v1935, %v1914
        %v1981 = vmul.f32 %v1935, %v1915
        %v1982 = vmul.f32 %v1935, %v1916
        %v1983 = vmul.f32 %v1935, %v1917
        %v1984 = vmul.f32 %v1935, %v1918
        %v1985 = vmul.f32 %v1935, %v1919
        %v1986 = vmul.f32 %v1935, %v1920
        %v1987 = vmul.f32 %v1935, %v1921
        %v1988 = vmul.f32 %v1935, %v1922
        %v1989 = vmul.f32 %v1935, %v1923
        %v1990 = vmul.f32 %v1935, %v1924
        %v1991 = vmul.f32 %v1935, %v1925
        %v1992 = vmul.f32 %v1935, %v1926
        %v1993 = vmul.f32 %v1935, %v1927
        %v1994 = vmul.f32 %v1935, %v1928
        %v1995 = vmul.f32 %v1935, %v1929
        %v1996 = vmul.f32 %v1935, %v1930
        %v1997 = vmul.f32 %v1935, %v1931
        %v1998 = vmul.f32 %v1935, %v1932
        %v1999 = vmul.f32 %v1935, %v1933
        %v2000 = vmul.f32 %v1935, %v1934
        %v2001 = vmul.f32 %v1936, 1.442695
        %v2002 = vpow.pop %v2001
        %v2003 = vmul.f32 %v1937, 1.442695
        %v2004 = vpow.pop %v2003
        %v2005 = vmul.f32 %v1938, 1.442695
        %v2006 = vpow.pop %v2005
        %v2007 = vmul.f32 %v1939, 1.442695
        %v2008 = vpow.pop %v2007
        %v2009 = vmul.f32 %v1940, 1.442695
        %v2010 = vpow.pop %v2009
        %v2011 = vmul.f32 %v1941, 1.442695
        %v2012 = vpow.pop %v2011
        %v2013 = vmul.f32 %v1942, 1.442695
        %v2014 = vpow.pop %v2013
        %v2015 = vmul.f32 %v1943, 1.442695
        %v2016 = vpow.pop %v2015
        %v2017 = vmul.f32 %v1944, 1.442695
        %v2018 = vpow.pop %v2017
        %v2019 = vmul.f32 %v1945, 1.442695
        %v2020 = vpow.pop %v2019
        %v2021 = vmul.f32 %v1946, 1.442695
        %v2022 = vpow.pop %v2021
        %v2023 = vmul.f32 %v1947, 1.442695
        %v2024 = vpow.pop %v2023
        %v2025 = vmul.f32 %v1948, 1.442695
        %v2026 = vpow.pop %v2025
        %v2027 = vmul.f32 %v1949, 1.442695
        %v2028 = vpow.pop %v2027
        %v2029 = vmul.f32 %v1950, 1.442695
        %v2030 = vpow.pop %v2029
        %v2031 = vmul.f32 %v1951, 1.442695
        %v2032 = vpow.pop %v2031
        %v2033 = vmul.f32 %v1952, 1.442695
        %v2034 = vpow.pop %v2033
        %v2035 = vmul.f32 %v1953, 1.442695
        %v2036 = vpow.pop %v2035
        %v2037 = vmul.f32 %v1954, 1.442695
        %v2038 = vpow.pop %v2037
        %v2039 = vmul.f32 %v1955, 1.442695
        %v2040 = vpow.pop %v2039
        %v2041 = vmul.f32 %v1956, 1.442695
        %v2042 = vpow.pop %v2041
        %v2043 = vmul.f32 %v1957, 1.442695
        %v2044 = vpow.pop %v2043
        %v2045 = vmul.f32 %v1958, 1.442695
        %v2046 = vpow.pop %v2045
        %v2047 = vmul.f32 %v1959, 1.442695
        %v2048 = vpow.pop %v2047
        %v2049 = vmul.f32 %v1960, 1.442695
        %v2050 = vpow.pop %v2049
        %v2051 = vmul.f32 %v1961, 1.442695
        %v2052 = vpow.pop %v2051
        %v2053 = vmul.f32 %v1962, 1.442695
        %v2054 = vpow.pop %v2053
        %v2055 = vmul.f32 %v1963, 1.442695
        %v2056 = vpow.pop %v2055
        %v2057 = vmul.f32 %v1964, 1.442695
        %v2058 = vpow.pop %v2057
        %v2059 = vmul.f32 %v1965, 1.442695
        %v2060 = vpow.pop %v2059
        %v2061 = vmul.f32 %v1966, 1.442695
        %v2062 = vpow.pop %v2061
        %v2063 = vmul.f32 %v1967, 1.442695
        %v2064 = vpow.pop %v2063
        %v2065 = vmul.f32 %v1968, 1.442695
        %v2066 = vpow.pop %v2065
        %v2067 = vmul.f32 %v1969, 1.442695
        %v2068 = vpow.pop %v2067
        %v2069 = vmul.f32 %v1970, 1.442695
        %v2070 = vpow.pop %v2069
        %v2071 = vmul.f32 %v1971, 1.442695
        %v2072 = vpow.pop %v2071
        %v2073 = vmul.f32 %v1972, 1.442695
        %v2074 = vpow.pop %v2073
        %v2075 = vmul.f32 %v1973, 1.442695
        %v2076 = vpow.pop %v2075
        %v2077 = vmul.f32 %v1974, 1.442695
        %v2078 = vpow.pop %v2077
        %v2079 = vmul.f32 %v1975, 1.442695
        %v2080 = vpow.pop %v2079
        %v2081 = vmul.f32 %v1976, 1.442695
        %v2082 = vpow.pop %v2081
        %v2083 = vmul.f32 %v1977, 1.442695
        %v2084 = vpow.pop %v2083
        %v2085 = vmul.f32 %v1978, 1.442695
        %v2086 = vpow.pop %v2085
        %v2087 = vmul.f32 %v1979, 1.442695
        %v2088 = vpow.pop %v2087
        %v2089 = vmul.f32 %v1980, 1.442695
        %v2090 = vpow.pop %v2089
        %v2091 = vmul.f32 %v1981, 1.442695
        %v2092 = vpow.pop %v2091
        %v2093 = vmul.f32 %v1982, 1.442695
        %v2094 = vpow.pop %v2093
        %v2095 = vmul.f32 %v1983, 1.442695
        %v2096 = vpow.pop %v2095
        %v2097 = vmul.f32 %v1984, 1.442695
        %v2098 = vpow.pop %v2097
        %v2099 = vmul.f32 %v1985, 1.442695
        %v2100 = vpow.pop %v2099
        %v2101 = vmul.f32 %v1986, 1.442695
        %v2102 = vpow.pop %v2101
        %v2103 = vmul.f32 %v1987, 1.442695
        %v2104 = vpow.pop %v2103
        %v2105 = vmul.f32 %v1988, 1.442695
        %v2106 = vpow.pop %v2105
        %v2107 = vmul.f32 %v1989, 1.442695
        %v2108 = vpow.pop %v2107
        %v2109 = vmul.f32 %v1990, 1.442695
        %v2110 = vpow.pop %v2109
        %v2111 = vmul.f32 %v1991, 1.442695
        %v2112 = vpow.pop %v2111
        %v2113 = vmul.f32 %v1992, 1.442695
        %v2114 = vpow.pop %v2113
        %v2115 = vmul.f32 %v1993, 1.442695
        %v2116 = vpow.pop %v2115
        %v2117 = vmul.f32 %v1994, 1.442695
        %v2118 = vpow.pop %v2117
        %v2119 = vmul.f32 %v1995, 1.442695
        %v2120 = vpow.pop %v2119
        %v2121 = vmul.f32 %v1996, 1.442695
        %v2122 = vpow.pop %v2121
        %v2123 = vmul.f32 %v1997, 1.442695
        %v2124 = vpow.pop %v2123
        %v2125 = vmul.f32 %v1998, 1.442695
        %v2126 = vpow.pop %v2125
        %v2127 = vmul.f32 %v1999, 1.442695
        %v2128 = vpow.pop %v2127
        %v2129 = vmul.f32 %v2000, 1.442695
        %v2130 = vpow.pop %v2129
        %2131 = vst [vmem:[%s149] sm:$0xff] %v2002
        %2132 = vst [vmem:[%s149 + $0x8] sm:$0xff] %v2004
        %2133 = vst [vmem:[%s149 + $0x10] sm:$0xff] %v2006
        %2134 = vst [vmem:[%s149 + $0x18] sm:$0xff] %v2008
        %2135 = vst [vmem:[%s149 + $0x20] sm:$0xff] %v2010
        %2136 = vst [vmem:[%s149 + $0x28] sm:$0xff] %v2012
        %2137 = vst [vmem:[%s149 + $0x30] sm:$0xff] %v2014
        %2138 = vst [vmem:[%s149 + $0x38] sm:$0xff] %v2016
        %2139 = vst [vmem:[%s149 + $0x40] sm:$0xff] %v2018
        %2140 = vst [vmem:[%s149 + $0x48] sm:$0xff] %v2020
        %2141 = vst [vmem:[%s149 + $0x50] sm:$0xff] %v2022
        %2142 = vst [vmem:[%s149 + $0x58] sm:$0xff] %v2024
        %2143 = vst [vmem:[%s149 + $0x60] sm:$0xff] %v2026
        %2144 = vst [vmem:[%s149 + $0x68] sm:$0xff] %v2028
        %2145 = vst [vmem:[%s149 + $0x70] sm:$0xff] %v2030
        %2146 = vst [vmem:[%s149 + $0x78] sm:$0xff] %v2032
        %2147 = vst [vmem:[%s149 + $0x80] sm:$0xff] %v2034
        %2148 = vst [vmem:[%s149 + $0x88] sm:$0xff] %v2036
        %2149 = vst [vmem:[%s149 + $0x90] sm:$0xff] %v2038
        %2150 = vst [vmem:[%s149 + $0x98] sm:$0xff] %v2040
        %2151 = vst [vmem:[%s149 + $0xa0] sm:$0xff] %v2042
        %2152 = vst [vmem:[%s149 + $0xa8] sm:$0xff] %v2044
        %2153 = vst [vmem:[%s149 + $0xb0] sm:$0xff] %v2046
        %2154 = vst [vmem:[%s149 + $0xb8] sm:$0xff] %v2048
        %2155 = vst [vmem:[%s149 + $0xc0] sm:$0xff] %v2050
        %2156 = vst [vmem:[%s149 + $0xc8] sm:$0xff] %v2052
        %2157 = vst [vmem:[%s149 + $0xd0] sm:$0xff] %v2054
        %2158 = vst [vmem:[%s149 + $0xd8] sm:$0xff] %v2056
        %2159 = vst [vmem:[%s149 + $0xe0] sm:$0xff] %v2058
        %2160 = vst [vmem:[%s149 + $0xe8] sm:$0xff] %v2060
        %2161 = vst [vmem:[%s149 + $0xf0] sm:$0xff] %v2062
        %2162 = vst [vmem:[%s149 + $0xf8] sm:$0xff] %v2064
        %2163 = vst [vmem:[%s149 + $0x100] sm:$0xff] %v2066
        %2164 = vst [vmem:[%s149 + $0x108] sm:$0xff] %v2068
        %2165 = vst [vmem:[%s149 + $0x110] sm:$0xff] %v2070
        %2166 = vst [vmem:[%s149 + $0x118] sm:$0xff] %v2072
        %2167 = vst [vmem:[%s149 + $0x120] sm:$0xff] %v2074
        %2168 = vst [vmem:[%s149 + $0x128] sm:$0xff] %v2076
        %2169 = vst [vmem:[%s149 + $0x130] sm:$0xff] %v2078
        %2170 = vst [vmem:[%s149 + $0x138] sm:$0xff] %v2080
        %2171 = vst [vmem:[%s149 + $0x140] sm:$0xff] %v2082
        %2172 = vst [vmem:[%s149 + $0x148] sm:$0xff] %v2084
        %2173 = vst [vmem:[%s149 + $0x150] sm:$0xff] %v2086
        %2174 = vst [vmem:[%s149 + $0x158] sm:$0xff] %v2088
        %2175 = vst [vmem:[%s149 + $0x160] sm:$0xff] %v2090
        %2176 = vst [vmem:[%s149 + $0x168] sm:$0xff] %v2092
        %2177 = vst [vmem:[%s149 + $0x170] sm:$0xff] %v2094
        %2178 = vst [vmem:[%s149 + $0x178] sm:$0xff] %v2096
        %2179 = vst [vmem:[%s149 + $0x180] sm:$0xff] %v2098
        %2180 = vst [vmem:[%s149 + $0x188] sm:$0xff] %v2100
        %2181 = vst [vmem:[%s149 + $0x190] sm:$0xff] %v2102
        %2182 = vst [vmem:[%s149 + $0x198] sm:$0xff] %v2104
        %2183 = vst [vmem:[%s149 + $0x1a0] sm:$0xff] %v2106
        %2184 = vst [vmem:[%s149 + $0x1a8] sm:$0xff] %v2108
        %2185 = vst [vmem:[%s149 + $0x1b0] sm:$0xff] %v2110
        %2186 = vst [vmem:[%s149 + $0x1b8] sm:$0xff] %v2112
        %2187 = vst [vmem:[%s149 + $0x1c0] sm:$0xff] %v2114
        %2188 = vst [vmem:[%s149 + $0x1c8] sm:$0xff] %v2116
        %2189 = vst [vmem:[%s149 + $0x1d0] sm:$0xff] %v2118
        %2190 = vst [vmem:[%s149 + $0x1d8] sm:$0xff] %v2120
        %2191 = vst [vmem:[%s149 + $0x1e0] sm:$0xff] %v2122
        %2192 = vst [vmem:[%s149 + $0x1e8] sm:$0xff] %v2124
        %2193 = vst [vmem:[%s149 + $0x1f0] sm:$0xff] %v2126
        %2194 = vst [vmem:[%s149 + $0x1f8] sm:$0xff] %v2128
        %2195 = vst [vmem:[%s149 + $0x200] sm:$0xff] %v2130
        %s2196 = sand.u32 %s71, 1
        %s2197 = scalar_lea.sflag [#allocation3], %s2196
        %s2198 = sand.u32 %s71, 1
        %s2199 = smul.addr %s2198, 520
        %s2200 = scalar_lea.vmem [#allocation2], %s2199
        // Predicated region
        $region29: #{tpu_custom_call.1} parent=27 // pred_check
          %p2201 = pneg %p81
        $region30: #{tpu_custom_call.1} parent=27 // pred_check_branch
          %2203 = sbr.rel (%p2201) target = $region32
        $region31: #{tpu_custom_call.1} parent=27 // pred_region
          %s2204 = smul.u32 65, %s16
          %s2205 = ssub.s32 129, %s2204
          %p2206 = scmp.lt.s32.totalorder %s2205, 65
          %s2207 = scalar_select %p2206, %s2205, 65
          %s2208 = smul.u32 8, %s2207
          %s2209 = ssub.s32 520, %s2208
          %s2210 = sshll.u32 %s2209, 4
          %2211 = vsyncadd %s2197, %s2210
          %p2212 = scmp.ne.s32.totalorder 0, %s2208
          %s2213 = smul.addr %s2204, 8
          %s2214 = scalar_lea.hbm %s2, %s2213
          %s2215 = smul.u32 8, %s2207
          %s2216 = sshll.u32 %s2200, 4
          %s2217 = int_to_ptr.vmem [resolvable:$true] %s2216
          %s2218 = sshll.u32 %s2214, 4
          %s2219 = int_to_ptr.hbm [resolvable:$true] %s2218
          %s2220 = sshll.u32 %s2215, 4
          %2224 = dma.vmem_to_hbm [thread:$0]  (%p2212), %s2217, %s2220, %s2219, %s2197, 128, 128, 8
        $region32: #{tpu_custom_call.1} parent=27 // pred_fallthru
          _
      $region28: #{tpu_custom_call.1} parent=5 // pred_fallthru
        _
      %p2225 = scmp.le.s32.totalorder 2, %s11
      // Predicated region
      $region33: #{tpu_custom_call.1} parent=5 // pred_check
        %p2226 = pneg %p2225
      $region34: #{tpu_custom_call.1} parent=5 // pred_check_branch
        %2228 = sbr.rel (%p2226) target = $region36
      $region35: #{tpu_custom_call.1} parent=5 // pred_region
        %s2229 = ssub.s32 %s11, 2
        // Predicated region
        $region37: #{tpu_custom_call.1} parent=35 // pred_check
          %p2230 = pneg %p87
        $region38: #{tpu_custom_call.1} parent=35 // pred_check_branch
          %2232 = sbr.rel (%p2230) target = $region40
        $region39: #{tpu_custom_call.1} parent=35 // pred_region
          %s2233 = sand.u32 %s72, 1
          %s2234 = scalar_lea.sflag [#allocation3], %s2233
          %s2235 = sand.u32 %s72, 1
          %s2236 = smul.addr %s2235, 520
          %s2237 = scalar_lea.vmem [#allocation2], %s2236
          %2239 = dma.done %s2234, 8320
        $region40: #{tpu_custom_call.1} parent=35 // pred_fallthru
          _
      $region36: #{tpu_custom_call.1} parent=5 // pred_fallthru
        _
    $region6: #{tpu_custom_call.1} parent=1 // loop_footer
      %s15 = sadd.s32 1, %s11
    $region7: #{tpu_custom_call.1} parent=1 // loop_footer_branch
      %10 = sbr.rel target = $region3
    $region8: #{tpu_custom_call.1} parent=1 // loop_exit
      _
    %2240 = vsyncpa [#allocation3], 1
    %s2241 = scalar_lea.sflag [#allocation3], 1
    %2242 = vsyncpa %s2241, 1

</llo_original>
